<compile_context>
chip_gen: v5e
topology: v5e:2x2
jax: 0.10.0
libtpu: 0.0.40
codegen_flags: <defaults>
</compile_context>

<pallas_src>
import functools

import jax
import jax.numpy as jnp
from jax.experimental import pallas as pl
from jax.experimental.pallas import tpu as pltpu

EPS = 1e-5  # PyTorch InstanceNorm2d default eps


def _round_up(n, m):
    return ((n + m - 1) // m) * m


# ---------------- fused Pallas kernel ----------------

def _low_block_kernel(x_ref, g1_ref, be1_ref, g2_ref, be2_ref,
                      w1_ref, w2_ref, b1_ref, b2_ref,
                      o_ref, pad_ref, *, W):
    # x_ref:   (1, Cin_p, HW) f32      g*/be*: (1, C_p, 1) f32
    # w*_ref:  (9, Hid_p, C_p) bf16    b*_ref: (Hid_p, 1) f32
    # o_ref:   (1, Hid_p, HW) f32
    # pad_ref: (Cmax_p, HW + 2P) bf16 scratch, shared by both convs.
    HW = x_ref.shape[-1]
    Hid_p = o_ref.shape[1]
    Cmax_p, padW = pad_ref.shape
    P = (padW - HW) // 2
    inv_hw = 1.0 / HW

    # ---- one-time (per invocation) setup, reused by both convs ----
    # Only the halo strips ever need zeros; the payload [P:P+HW] is fully
    # rewritten by each conv.  The halo is never written anywhere else.
    zeros_halo = jnp.zeros((Cmax_p, P), jnp.bfloat16)
    pad_ref[:, 0:P] = zeros_halo
    pad_ref[:, P + HW:padW] = zeros_halo

    # Column-boundary masks (in output-position space), hoisted.
    col = jax.lax.broadcasted_iota(jnp.int32, (Cmax_p, HW), 1) % W
    left_ok = col >= 1           # tap dx=0 reads source column w-1
    right_ok = col <= W - 2      # tap dx=2 reads source column w+1

    def cond_norm(x, gamma, beta):
        # InstanceNorm2d stats (biased var) in one pass, folded with the
        # conditional affine into a single FMA.
        s1 = jnp.sum(x, axis=-1, keepdims=True)
        s2 = jnp.sum(x * x, axis=-1, keepdims=True)
        mean = s1 * inv_hw
        var = jnp.maximum(s2 * inv_hw - mean * mean, 0.0)
        scale = gamma * jax.lax.rsqrt(var + EPS)
        shift = beta - mean * scale
        return x * scale + shift

    def conv3x3_bias_relu(normed, w_ref, bias_ref):
        # normed: (Cp, HW) f32.  Write the bf16 payload once into the shared
        # zero-haloed slab; each of the 9 taps is a static shifted window of
        # it (the halo absorbs the row out-of-bounds; the hoisted masks handle
        # the left/right column wrap) and is fed directly to the MXU as an
        # accumulating matmul — no (9*Cp, HW) tap matrix is materialized.
        Cp = normed.shape[0]
        pad_ref[0:Cp, P:P + HW] = normed.astype(jnp.bfloat16)

        acc = jnp.zeros((Hid_p, HW), jnp.float32)
        for dy in range(3):
            for dx in range(3):
                k = dy * 3 + dx
                off = (dy - 1) * W + (dx - 1)
                t = pad_ref[0:Cp, P + off:P + off + HW]        # (Cp, HW) bf16
                if dx == 0:
                    t = jnp.where(left_ok[0:Cp], t, jnp.zeros_like(t))
                elif dx == 2:
                    t = jnp.where(right_ok[0:Cp], t, jnp.zeros_like(t))
                acc = acc + jnp.dot(w_ref[k], t,
                                    preferred_element_type=jnp.float32)
        return jnp.maximum(acc + bias_ref[...], 0.0)

    x = x_ref[0]                                               # (Cin_p, HW) f32
    n1 = cond_norm(x, g1_ref[0], be1_ref[0])
    h1 = conv3x3_bias_relu(n1, w1_ref, b1_ref)                 # (Hid_p, HW) f32
    n2 = cond_norm(h1, g2_ref[0], be2_ref[0])
    o_ref[0] = conv3x3_bias_relu(n2, w2_ref, b2_ref)


# ---------------- wrapper (layout glue in plain JAX) ----------------

def low_block_forward(params, x, t):
    B, Cin, H, W = x.shape
    hidden = params["w1"].shape[0]
    HW = H * W
    Cin_p = _round_up(Cin, 8)
    Hid_p = _round_up(hidden, 8)
    Cmax_p = max(Cin_p, Hid_p)
    P = _round_up(W + 1, 128)                 # lane-aligned halo for the slab

    # Conditional affine params (embedding lookup), zero-padded channels.
    e1 = params["emb1"][t]                    # (B, 2*Cin)
    e2 = params["emb2"][t]                    # (B, 2*hidden)

    def pad_cols(a, cp):                      # (B, C) -> (B, cp, 1)
        return jnp.pad(a, ((0, 0), (0, cp - a.shape[1])))[:, :, None].astype(jnp.float32)

    g1p, be1p = pad_cols(e1[:, :Cin], Cin_p), pad_cols(e1[:, Cin:], Cin_p)
    g2p, be2p = pad_cols(e2[:, :hidden], Hid_p), pad_cols(e2[:, hidden:], Hid_p)

    # Conv weights: OIHW -> (tap, O, I), zero-pad O/I to multiples of 8, bf16.
    # Leading tap dim => each tap's (O_p, I_p) weight slice is an aligned
    # leading-dim index in the kernel (no lane-offset slicing).
    def pack_w(w, op, ip):
        o, i = w.shape[0], w.shape[1]
        wt = jnp.transpose(w, (2, 3, 0, 1)).reshape(9, o, i)    # k = dy*3 + dx
        wt = jnp.pad(wt, ((0, 0), (0, op - o), (0, ip - i)))
        return wt.astype(jnp.bfloat16)

    w1m = pack_w(params["w1"], Hid_p, Cin_p)          # (9, Hid_p, Cin_p)
    w2m = pack_w(params["w2"], Hid_p, Hid_p)          # (9, Hid_p, Hid_p)
    b1 = jnp.pad(params["b1"], (0, Hid_p - hidden))[:, None].astype(jnp.float32)
    b2 = jnp.pad(params["b2"], (0, Hid_p - hidden))[:, None].astype(jnp.float32)

    # NCHW -> (B, Cin_p, H*W): a reshape + channel zero-pad, no transpose.
    x3 = jnp.pad(x.reshape(B, Cin, HW), ((0, 0), (0, Cin_p - Cin), (0, 0)))

    single = pl.Buffered(1)   # grid-invariant operands: no double-buffering
    kernel = functools.partial(_low_block_kernel, W=W)
    out = pl.pallas_call(
        kernel,
        grid=(B,),
        in_specs=[
            pl.BlockSpec((1, Cin_p, HW), lambda b: (b, 0, 0)),      # x
            pl.BlockSpec((1, Cin_p, 1), lambda b: (b, 0, 0)),       # gamma1
            pl.BlockSpec((1, Cin_p, 1), lambda b: (b, 0, 0)),       # beta1
            pl.BlockSpec((1, Hid_p, 1), lambda b: (b, 0, 0)),       # gamma2
            pl.BlockSpec((1, Hid_p, 1), lambda b: (b, 0, 0)),       # beta2
            pl.BlockSpec((9, Hid_p, Cin_p), lambda b: (0, 0, 0),
                         pipeline_mode=single),                     # w1 (bf16)
            pl.BlockSpec((9, Hid_p, Hid_p), lambda b: (0, 0, 0),
                         pipeline_mode=single),                     # w2 (bf16)
            pl.BlockSpec((Hid_p, 1), lambda b: (0, 0),
                         pipeline_mode=single),                     # b1
            pl.BlockSpec((Hid_p, 1), lambda b: (0, 0),
                         pipeline_mode=single),                     # b2
        ],
        out_specs=pl.BlockSpec((1, Hid_p, HW), lambda b: (b, 0, 0)),
        out_shape=jax.ShapeDtypeStruct((B, Hid_p, HW), jnp.float32),
        scratch_shapes=[
            # Single bf16 zero-haloed slab shared by both convs.
            pltpu.VMEM((Cmax_p, HW + 2 * P), jnp.bfloat16),
        ],
        compiler_params=pltpu.CompilerParams(
            dimension_semantics=("parallel",),
            # Tiny live set at these shapes; re-derive before scaling H*W or
            # channels (v7x has 64 MiB VMEM per core).
            vmem_limit_bytes=32 * 1024 * 1024,
        ),
    )(x3, g1p, be1p, g2p, be2p, w1m, w2m, b1, b2)

    # (B, Hid_p, HW) is already NCHW-flat; drop channel padding and unflatten.
    return out[:, :hidden, :].reshape(B, hidden, H, W)


# ---------------- params + pure-JAX reference for verification ----------------

def init_params(key, input_dim, hidden_dim, num_embedding=10):
    k = jax.random.split(key, 6)
    return {
        # time_embedding.weight ~ N(0, 0.02)
        "emb1": 0.02 * jax.random.normal(k[0], (num_embedding, 2 * input_dim), jnp.float32),
        "emb2": 0.02 * jax.random.normal(k[1], (num_embedding, 2 * hidden_dim), jnp.float32),
        # conv weights (OIHW, torch layout) + biases; deterministic synthetic init
        "w1": 0.1 * jax.random.normal(k[2], (hidden_dim, input_dim, 3, 3), jnp.float32),
        "b1": 0.1 * jax.random.normal(k[3], (hidden_dim,), jnp.float32),
        "w2": 0.1 * jax.random.normal(k[4], (hidden_dim, hidden_dim, 3, 3), jnp.float32),
        "b2": 0.1 * jax.random.normal(k[5], (hidden_dim,), jnp.float32),
    }


def _ref_forward(params, x, t):
    def cin(x, gamma, beta):
        mean = x.mean(axis=(2, 3), keepdims=True)
        var = x.var(axis=(2, 3), keepdims=True)
        out = (x - mean) / jnp.sqrt(var + EPS)
        return gamma[:, :, None, None] * out + beta[:, :, None, None]

    def conv(x, w, b):
        y = jax.lax.conv_general_dilated(
            x, w, window_strides=(1, 1), padding="SAME",
            dimension_numbers=("NCHW", "OIHW", "NCHW"))
        return jnp.maximum(y + b[None, :, None, None], 0.0)

    g1, be1 = jnp.split(params["emb1"][t], 2, axis=-1)
    h = conv(cin(x, g1, be1), params["w1"], params["b1"])
    g2, be2 = jnp.split(params["emb2"][t], 2, axis=-1)
    h = conv(cin(h, g2, be2), params["w2"], params["b2"])
    return h


if __name__ == "__main__":
    key = jax.random.PRNGKey(0)
    kx, kt, kp = jax.random.split(key, 3)

    B, input_dim, hidden_dim, H, W = 2, 4, 8, 16, 16
    x = jax.random.normal(kx, (B, input_dim, H, W), jnp.float32)
    t = jax.random.randint(kt, (B,), 0, 10, dtype=jnp.int32)
    params = init_params(kp, input_dim, hidden_dim)

    fwd = jax.jit(low_block_forward)
    out = jax.block_until_ready(fwd(params, x, t))
    ref = jax.block_until_ready(_ref_forward(params, x, t))

    assert out.shape == (B, hidden_dim, H, W), out.shape
    err = float(jnp.max(jnp.abs(out - ref)))
    assert jnp.allclose(out, ref, atol=3e-2, rtol=3e-2), f"max abs err {err}"
    print("KERNEL_OK")
</pallas_src>

<mosaic_0001>
module attributes {stable_mosaic.version = 11 : i64} {
  func.func @_low_block_kernel(%arg0: i32, %arg1: memref<1x8x256xf32, #tpu.memory_space<vmem>>, %arg2: memref<1x8x1xf32, #tpu.memory_space<vmem>>, %arg3: memref<1x8x1xf32, #tpu.memory_space<vmem>>, %arg4: memref<1x8x1xf32, #tpu.memory_space<vmem>>, %arg5: memref<1x8x1xf32, #tpu.memory_space<vmem>>, %arg6: memref<9x8x8xbf16, #tpu.memory_space<vmem>>, %arg7: memref<9x8x8xbf16, #tpu.memory_space<vmem>>, %arg8: memref<8x1xf32, #tpu.memory_space<vmem>>, %arg9: memref<8x1xf32, #tpu.memory_space<vmem>>, %arg10: memref<1x8x256xf32, #tpu.memory_space<vmem>>, %arg11: memref<8x512xbf16, #tpu.memory_space<vmem>>) attributes {dimension_semantics = [#tpu.dimension_semantics<parallel>], iteration_bounds = array<i64: 2>, scalar_prefetch = 0 : i64, scratch_operands = 1 : i64, tpu.core_type = #tpu.core_type<tc>, window_params = [{transform_indices = @transform_0, window_bounds = array<i64: 1, 8, 256>}, {transform_indices = @transform_1, window_bounds = array<i64: 1, 8, 1>}, {transform_indices = @transform_2, window_bounds = array<i64: 1, 8, 1>}, {transform_indices = @transform_3, window_bounds = array<i64: 1, 8, 1>}, {transform_indices = @transform_4, window_bounds = array<i64: 1, 8, 1>}, {pipeline_mode = #tpu.pipeline_mode<synchronous>, transform_indices = @transform_5, window_bounds = array<i64: 9, 8, 8>}, {pipeline_mode = #tpu.pipeline_mode<synchronous>, transform_indices = @transform_6, window_bounds = array<i64: 9, 8, 8>}, {pipeline_mode = #tpu.pipeline_mode<synchronous>, transform_indices = @transform_7, window_bounds = array<i64: 8, 1>}, {pipeline_mode = #tpu.pipeline_mode<synchronous>, transform_indices = @transform_8, window_bounds = array<i64: 8, 1>}, {transform_indices = @transform_9, window_bounds = array<i64: 1, 8, 256>}]} {
    %cst = arith.constant 0.000000e+00 : bf16
    %0 = vector.broadcast %cst : bf16 to vector<8x128xbf16>
    %c0 = arith.constant 0 : index
    %c0_0 = arith.constant 0 : index
    %1 = vector.load %arg11[%c0, %c0_0] : memref<8x512xbf16, #tpu.memory_space<vmem>>, vector<8x128xbf16>
    tpu.vector_store %arg11[%c0, %c0_0], %0 {strides = array<i32>} : memref<8x512xbf16, #tpu.memory_space<vmem>>, vector<8x128xbf16>,
    %c0_1 = arith.constant 0 : index
    %c384 = arith.constant 384 : index
    %2 = vector.load %arg11[%c0_1, %c384] : memref<8x512xbf16, #tpu.memory_space<vmem>>, vector<8x128xbf16>
    tpu.vector_store %arg11[%c0_1, %c384], %0 {strides = array<i32>} : memref<8x512xbf16, #tpu.memory_space<vmem>>, vector<8x128xbf16>,
    %3 = tpu.iota {dimensions = array<i32: 1>} : vector<8x256xi32>
    %c16_i32 = arith.constant 16 : i32
    %c0_i32 = arith.constant 0 : i32
    %4 = arith.cmpi eq, %c16_i32, %c0_i32 : i32
    %c1_i32 = arith.constant 1 : i32
    %5 = arith.select %4, %c1_i32, %c16_i32 : i32
    %6 = vector.broadcast %5 : i32 to vector<8x256xi32>
    %7 = arith.remsi %3, %6 : vector<8x256xi32>
    %c0_i32_2 = arith.constant 0 : i32
    %8 = vector.broadcast %c0_i32_2 : i32 to vector<8x256xi32>
    %9 = arith.cmpi ne, %7, %8 : vector<8x256xi32>
    %c0_i32_3 = arith.constant 0 : i32
    %10 = vector.broadcast %c0_i32_3 : i32 to vector<8x256xi32>
    %11 = arith.cmpi slt, %7, %10 : vector<8x256xi32>
    %c0_i32_4 = arith.constant 0 : i32
    %12 = arith.cmpi slt, %5, %c0_i32_4 : i32
    %13 = vector.broadcast %12 : i1 to vector<8x256xi1>
    %14 = vector.broadcast %13 : vector<8x256xi1> to vector<8x256xi1>
    %15 = arith.xori %11, %14 : vector<8x256xi1>
    %16 = arith.andi %15, %9 : vector<8x256xi1>
    %17 = vector.broadcast %5 : i32 to vector<8x256xi32>
    %18 = arith.addi %7, %17 : vector<8x256xi32>
    %19 = arith.select %16, %18, %7 : vector<8x256xi1>, vector<8x256xi32>
    %c1_i32_5 = arith.constant 1 : i32
    %20 = vector.broadcast %c1_i32_5 : i32 to vector<8x256xi32>
    %21 = arith.cmpi sge, %19, %20 : vector<8x256xi32>
    %c14_i32 = arith.constant 14 : i32
    %22 = vector.broadcast %c14_i32 : i32 to vector<8x256xi32>
    %23 = arith.cmpi sle, %19, %22 : vector<8x256xi32>
    %c0_6 = arith.constant 0 : index
    %c0_7 = arith.constant 0 : index
    %c0_8 = arith.constant 0 : index
    %24 = vector.load %arg1[%c0_6, %c0_7, %c0_8] : memref<1x8x256xf32, #tpu.memory_space<vmem>>, vector<1x8x256xf32>
    %25 = vector.shape_cast %24 : vector<1x8x256xf32> to vector<8x256xf32>
    %c0_9 = arith.constant 0 : index
    %c0_10 = arith.constant 0 : index
    %c0_11 = arith.constant 0 : index
    %26 = vector.load %arg2[%c0_9, %c0_10, %c0_11] : memref<1x8x1xf32, #tpu.memory_space<vmem>>, vector<1x8x1xf32>
    %27 = vector.shape_cast %26 : vector<1x8x1xf32> to vector<8x1xf32>
    %c0_12 = arith.constant 0 : index
    %c0_13 = arith.constant 0 : index
    %c0_14 = arith.constant 0 : index
    %28 = vector.load %arg3[%c0_12, %c0_13, %c0_14] : memref<1x8x1xf32, #tpu.memory_space<vmem>>, vector<1x8x1xf32>
    %29 = vector.shape_cast %28 : vector<1x8x1xf32> to vector<8x1xf32>
    %cst_15 = arith.constant dense<0.000000e+00> : vector<8xf32>
    %30 = vector.multi_reduction <add>, %25, %cst_15 [1] : vector<8x256xf32> to vector<8xf32>
    %31 = vector.shape_cast %30 : vector<8xf32> to vector<8x1xf32>
    %32 = arith.mulf %25, %25 : vector<8x256xf32>
    %cst_16 = arith.constant dense<0.000000e+00> : vector<8xf32>
    %33 = vector.multi_reduction <add>, %32, %cst_16 [1] : vector<8x256xf32> to vector<8xf32>
    %34 = vector.shape_cast %33 : vector<8xf32> to vector<8x1xf32>
    %cst_17 = arith.constant 3.906250e-03 : f32
    %35 = vector.broadcast %cst_17 : f32 to vector<8x1xf32>
    %36 = arith.mulf %31, %35 : vector<8x1xf32>
    %cst_18 = arith.constant 3.906250e-03 : f32
    %37 = vector.broadcast %cst_18 : f32 to vector<8x1xf32>
    %38 = arith.mulf %34, %37 : vector<8x1xf32>
    %39 = arith.mulf %36, %36 : vector<8x1xf32>
    %40 = arith.subf %38, %39 : vector<8x1xf32>
    %cst_19 = arith.constant 0.000000e+00 : f32
    %41 = vector.broadcast %cst_19 : f32 to vector<8x1xf32>
    %42 = arith.maximumf %40, %41 : vector<8x1xf32>
    %cst_20 = arith.constant 9.99999974E-6 : f32
    %43 = vector.broadcast %cst_20 : f32 to vector<8x1xf32>
    %44 = arith.addf %42, %43 : vector<8x1xf32>
    %45 = math.rsqrt %44 : vector<8x1xf32>
    %46 = arith.mulf %27, %45 : vector<8x1xf32>
    %47 = arith.mulf %36, %46 : vector<8x1xf32>
    %48 = arith.subf %29, %47 : vector<8x1xf32>
    %49 = vector.broadcast %46 : vector<8x1xf32> to vector<8x256xf32>
    %50 = arith.mulf %25, %49 : vector<8x256xf32>
    %51 = vector.broadcast %48 : vector<8x1xf32> to vector<8x256xf32>
    %52 = arith.addf %50, %51 : vector<8x256xf32>
    %53 = arith.truncf %52 : vector<8x256xf32> to vector<8x256xbf16>
    %c0_21 = arith.constant 0 : index
    %c128 = arith.constant 128 : index
    %54 = vector.load %arg11[%c0_21, %c128] : memref<8x512xbf16, #tpu.memory_space<vmem>>, vector<8x256xbf16>
    tpu.vector_store %arg11[%c0_21, %c128], %53 {strides = array<i32>} : memref<8x512xbf16, #tpu.memory_space<vmem>>, vector<8x256xbf16>,
    %cst_22 = arith.constant 0.000000e+00 : f32
    %55 = vector.broadcast %cst_22 : f32 to vector<8x256xf32>
    %c0_23 = arith.constant 0 : index
    %c111 = arith.constant 111 : index
    %56 = vector.load %arg11[%c0_23, %c111] : memref<8x512xbf16, #tpu.memory_space<vmem>>, vector<8x256xbf16>
    %cst_24 = arith.constant 0.000000e+00 : bf16
    %57 = vector.broadcast %cst_24 : bf16 to vector<8x256xbf16>
    %58 = arith.select %21, %56, %57 : vector<8x256xi1>, vector<8x256xbf16>
    %c0_25 = arith.constant 0 : index
    %c0_26 = arith.constant 0 : index
    %c0_27 = arith.constant 0 : index
    %59 = vector.load %arg6[%c0_25, %c0_26, %c0_27] : memref<9x8x8xbf16, #tpu.memory_space<vmem>>, vector<1x8x8xbf16>
    %60 = vector.shape_cast %59 : vector<1x8x8xbf16> to vector<8x8xbf16>
    %cst_28 = arith.constant dense<0.000000e+00> : vector<8x256xf32>
    %61 = tpu.matmul %60, %58, %cst_28 {dimension_numbers = #tpu.dot_dimension_numbers<[1], [0], [0], [1], [0, 0, 1, 1], [], []>} : vector<8x8xbf16>, vector<8x256xbf16>, vector<8x256xf32> -> vector<8x256xf32>
    %62 = arith.addf %55, %61 : vector<8x256xf32>
    %c0_29 = arith.constant 0 : index
    %c112 = arith.constant 112 : index
    %63 = vector.load %arg11[%c0_29, %c112] : memref<8x512xbf16, #tpu.memory_space<vmem>>, vector<8x256xbf16>
    %c1 = arith.constant 1 : index
    %c0_30 = arith.constant 0 : index
    %c0_31 = arith.constant 0 : index
    %64 = vector.load %arg6[%c1, %c0_30, %c0_31] : memref<9x8x8xbf16, #tpu.memory_space<vmem>>, vector<1x8x8xbf16>
    %65 = vector.shape_cast %64 : vector<1x8x8xbf16> to vector<8x8xbf16>
    %cst_32 = arith.constant dense<0.000000e+00> : vector<8x256xf32>
    %66 = tpu.matmul %65, %63, %cst_32 {dimension_numbers = #tpu.dot_dimension_numbers<[1], [0], [0], [1], [0, 0, 1, 1], [], []>} : vector<8x8xbf16>, vector<8x256xbf16>, vector<8x256xf32> -> vector<8x256xf32>
    %67 = arith.addf %62, %66 : vector<8x256xf32>
    %c0_33 = arith.constant 0 : index
    %c113 = arith.constant 113 : index
    %68 = vector.load %arg11[%c0_33, %c113] : memref<8x512xbf16, #tpu.memory_space<vmem>>, vector<8x256xbf16>
    %cst_34 = arith.constant 0.000000e+00 : bf16
    %69 = vector.broadcast %cst_34 : bf16 to vector<8x256xbf16>
    %70 = arith.select %23, %68, %69 : vector<8x256xi1>, vector<8x256xbf16>
    %c2 = arith.constant 2 : index
    %c0_35 = arith.constant 0 : index
    %c0_36 = arith.constant 0 : index
    %71 = vector.load %arg6[%c2, %c0_35, %c0_36] : memref<9x8x8xbf16, #tpu.memory_space<vmem>>, vector<1x8x8xbf16>
    %72 = vector.shape_cast %71 : vector<1x8x8xbf16> to vector<8x8xbf16>
    %cst_37 = arith.constant dense<0.000000e+00> : vector<8x256xf32>
    %73 = tpu.matmul %72, %70, %cst_37 {dimension_numbers = #tpu.dot_dimension_numbers<[1], [0], [0], [1], [0, 0, 1, 1], [], []>} : vector<8x8xbf16>, vector<8x256xbf16>, vector<8x256xf32> -> vector<8x256xf32>
    %74 = arith.addf %67, %73 : vector<8x256xf32>
    %c0_38 = arith.constant 0 : index
    %c127 = arith.constant 127 : index
    %75 = vector.load %arg11[%c0_38, %c127] : memref<8x512xbf16, #tpu.memory_space<vmem>>, vector<8x256xbf16>
    %cst_39 = arith.constant 0.000000e+00 : bf16
    %76 = vector.broadcast %cst_39 : bf16 to vector<8x256xbf16>
    %77 = arith.select %21, %75, %76 : vector<8x256xi1>, vector<8x256xbf16>
    %c3 = arith.constant 3 : index
    %c0_40 = arith.constant 0 : index
    %c0_41 = arith.constant 0 : index
    %78 = vector.load %arg6[%c3, %c0_40, %c0_41] : memref<9x8x8xbf16, #tpu.memory_space<vmem>>, vector<1x8x8xbf16>
    %79 = vector.shape_cast %78 : vector<1x8x8xbf16> to vector<8x8xbf16>
    %cst_42 = arith.constant dense<0.000000e+00> : vector<8x256xf32>
    %80 = tpu.matmul %79, %77, %cst_42 {dimension_numbers = #tpu.dot_dimension_numbers<[1], [0], [0], [1], [0, 0, 1, 1], [], []>} : vector<8x8xbf16>, vector<8x256xbf16>, vector<8x256xf32> -> vector<8x256xf32>
    %81 = arith.addf %74, %80 : vector<8x256xf32>
    %c0_43 = arith.constant 0 : index
    %c128_44 = arith.constant 128 : index
    %82 = vector.load %arg11[%c0_43, %c128_44] : memref<8x512xbf16, #tpu.memory_space<vmem>>, vector<8x256xbf16>
    %c4 = arith.constant 4 : index
    %c0_45 = arith.constant 0 : index
    %c0_46 = arith.constant 0 : index
    %83 = vector.load %arg6[%c4, %c0_45, %c0_46] : memref<9x8x8xbf16, #tpu.memory_space<vmem>>, vector<1x8x8xbf16>
    %84 = vector.shape_cast %83 : vector<1x8x8xbf16> to vector<8x8xbf16>
    %cst_47 = arith.constant dense<0.000000e+00> : vector<8x256xf32>
    %85 = tpu.matmul %84, %82, %cst_47 {dimension_numbers = #tpu.dot_dimension_numbers<[1], [0], [0], [1], [0, 0, 1, 1], [], []>} : vector<8x8xbf16>, vector<8x256xbf16>, vector<8x256xf32> -> vector<8x256xf32>
    %86 = arith.addf %81, %85 : vector<8x256xf32>
    %c0_48 = arith.constant 0 : index
    %c129 = arith.constant 129 : index
    %87 = vector.load %arg11[%c0_48, %c129] : memref<8x512xbf16, #tpu.memory_space<vmem>>, vector<8x256xbf16>
    %cst_49 = arith.constant 0.000000e+00 : bf16
    %88 = vector.broadcast %cst_49 : bf16 to vector<8x256xbf16>
    %89 = arith.select %23, %87, %88 : vector<8x256xi1>, vector<8x256xbf16>
    %c5 = arith.constant 5 : index
    %c0_50 = arith.constant 0 : index
    %c0_51 = arith.constant 0 : index
    %90 = vector.load %arg6[%c5, %c0_50, %c0_51] : memref<9x8x8xbf16, #tpu.memory_space<vmem>>, vector<1x8x8xbf16>
    %91 = vector.shape_cast %90 : vector<1x8x8xbf16> to vector<8x8xbf16>
    %cst_52 = arith.constant dense<0.000000e+00> : vector<8x256xf32>
    %92 = tpu.matmul %91, %89, %cst_52 {dimension_numbers = #tpu.dot_dimension_numbers<[1], [0], [0], [1], [0, 0, 1, 1], [], []>} : vector<8x8xbf16>, vector<8x256xbf16>, vector<8x256xf32> -> vector<8x256xf32>
    %93 = arith.addf %86, %92 : vector<8x256xf32>
    %c0_53 = arith.constant 0 : index
    %c143 = arith.constant 143 : index
    %94 = vector.load %arg11[%c0_53, %c143] : memref<8x512xbf16, #tpu.memory_space<vmem>>, vector<8x256xbf16>
    %cst_54 = arith.constant 0.000000e+00 : bf16
    %95 = vector.broadcast %cst_54 : bf16 to vector<8x256xbf16>
    %96 = arith.select %21, %94, %95 : vector<8x256xi1>, vector<8x256xbf16>
    %c6 = arith.constant 6 : index
    %c0_55 = arith.constant 0 : index
    %c0_56 = arith.constant 0 : index
    %97 = vector.load %arg6[%c6, %c0_55, %c0_56] : memref<9x8x8xbf16, #tpu.memory_space<vmem>>, vector<1x8x8xbf16>
    %98 = vector.shape_cast %97 : vector<1x8x8xbf16> to vector<8x8xbf16>
    %cst_57 = arith.constant dense<0.000000e+00> : vector<8x256xf32>
    %99 = tpu.matmul %98, %96, %cst_57 {dimension_numbers = #tpu.dot_dimension_numbers<[1], [0], [0], [1], [0, 0, 1, 1], [], []>} : vector<8x8xbf16>, vector<8x256xbf16>, vector<8x256xf32> -> vector<8x256xf32>
    %100 = arith.addf %93, %99 : vector<8x256xf32>
    %c0_58 = arith.constant 0 : index
    %c144 = arith.constant 144 : index
    %101 = vector.load %arg11[%c0_58, %c144] : memref<8x512xbf16, #tpu.memory_space<vmem>>, vector<8x256xbf16>
    %c7 = arith.constant 7 : index
    %c0_59 = arith.constant 0 : index
    %c0_60 = arith.constant 0 : index
    %102 = vector.load %arg6[%c7, %c0_59, %c0_60] : memref<9x8x8xbf16, #tpu.memory_space<vmem>>, vector<1x8x8xbf16>
    %103 = vector.shape_cast %102 : vector<1x8x8xbf16> to vector<8x8xbf16>
    %cst_61 = arith.constant dense<0.000000e+00> : vector<8x256xf32>
    %104 = tpu.matmul %103, %101, %cst_61 {dimension_numbers = #tpu.dot_dimension_numbers<[1], [0], [0], [1], [0, 0, 1, 1], [], []>} : vector<8x8xbf16>, vector<8x256xbf16>, vector<8x256xf32> -> vector<8x256xf32>
    %105 = arith.addf %100, %104 : vector<8x256xf32>
    %c0_62 = arith.constant 0 : index
    %c145 = arith.constant 145 : index
    %106 = vector.load %arg11[%c0_62, %c145] : memref<8x512xbf16, #tpu.memory_space<vmem>>, vector<8x256xbf16>
    %cst_63 = arith.constant 0.000000e+00 : bf16
    %107 = vector.broadcast %cst_63 : bf16 to vector<8x256xbf16>
    %108 = arith.select %23, %106, %107 : vector<8x256xi1>, vector<8x256xbf16>
    %c8 = arith.constant 8 : index
    %c0_64 = arith.constant 0 : index
    %c0_65 = arith.constant 0 : index
    %109 = vector.load %arg6[%c8, %c0_64, %c0_65] : memref<9x8x8xbf16, #tpu.memory_space<vmem>>, vector<1x8x8xbf16>
    %110 = vector.shape_cast %109 : vector<1x8x8xbf16> to vector<8x8xbf16>
    %cst_66 = arith.constant dense<0.000000e+00> : vector<8x256xf32>
    %111 = tpu.matmul %110, %108, %cst_66 {dimension_numbers = #tpu.dot_dimension_numbers<[1], [0], [0], [1], [0, 0, 1, 1], [], []>} : vector<8x8xbf16>, vector<8x256xbf16>, vector<8x256xf32> -> vector<8x256xf32>
    %112 = arith.addf %105, %111 : vector<8x256xf32>
    %c0_67 = arith.constant 0 : index
    %c0_68 = arith.constant 0 : index
    %113 = vector.load %arg8[%c0_67, %c0_68] : memref<8x1xf32, #tpu.memory_space<vmem>>, vector<8x1xf32>
    %114 = vector.broadcast %113 : vector<8x1xf32> to vector<8x256xf32>
    %115 = arith.addf %112, %114 : vector<8x256xf32>
    %cst_69 = arith.constant 0.000000e+00 : f32
    %116 = vector.broadcast %cst_69 : f32 to vector<8x256xf32>
    %117 = arith.maximumf %115, %116 : vector<8x256xf32>
    %c0_70 = arith.constant 0 : index
    %c0_71 = arith.constant 0 : index
    %c0_72 = arith.constant 0 : index
    %118 = vector.load %arg4[%c0_70, %c0_71, %c0_72] : memref<1x8x1xf32, #tpu.memory_space<vmem>>, vector<1x8x1xf32>
    %119 = vector.shape_cast %118 : vector<1x8x1xf32> to vector<8x1xf32>
    %c0_73 = arith.constant 0 : index
    %c0_74 = arith.constant 0 : index
    %c0_75 = arith.constant 0 : index
    %120 = vector.load %arg5[%c0_73, %c0_74, %c0_75] : memref<1x8x1xf32, #tpu.memory_space<vmem>>, vector<1x8x1xf32>
    %121 = vector.shape_cast %120 : vector<1x8x1xf32> to vector<8x1xf32>
    %cst_76 = arith.constant dense<0.000000e+00> : vector<8xf32>
    %122 = vector.multi_reduction <add>, %117, %cst_76 [1] : vector<8x256xf32> to vector<8xf32>
    %123 = vector.shape_cast %122 : vector<8xf32> to vector<8x1xf32>
    %124 = arith.mulf %117, %117 : vector<8x256xf32>
    %cst_77 = arith.constant dense<0.000000e+00> : vector<8xf32>
    %125 = vector.multi_reduction <add>, %124, %cst_77 [1] : vector<8x256xf32> to vector<8xf32>
    %126 = vector.shape_cast %125 : vector<8xf32> to vector<8x1xf32>
    %cst_78 = arith.constant 3.906250e-03 : f32
    %127 = vector.broadcast %cst_78 : f32 to vector<8x1xf32>
    %128 = arith.mulf %123, %127 : vector<8x1xf32>
    %cst_79 = arith.constant 3.906250e-03 : f32
    %129 = vector.broadcast %cst_79 : f32 to vector<8x1xf32>
    %130 = arith.mulf %126, %129 : vector<8x1xf32>
    %131 = arith.mulf %128, %128 : vector<8x1xf32>
    %132 = arith.subf %130, %131 : vector<8x1xf32>
    %cst_80 = arith.constant 0.000000e+00 : f32
    %133 = vector.broadcast %cst_80 : f32 to vector<8x1xf32>
    %134 = arith.maximumf %132, %133 : vector<8x1xf32>
    %cst_81 = arith.constant 9.99999974E-6 : f32
    %135 = vector.broadcast %cst_81 : f32 to vector<8x1xf32>
    %136 = arith.addf %134, %135 : vector<8x1xf32>
    %137 = math.rsqrt %136 : vector<8x1xf32>
    %138 = arith.mulf %119, %137 : vector<8x1xf32>
    %139 = arith.mulf %128, %138 : vector<8x1xf32>
    %140 = arith.subf %121, %139 : vector<8x1xf32>
    %141 = vector.broadcast %138 : vector<8x1xf32> to vector<8x256xf32>
    %142 = arith.mulf %117, %141 : vector<8x256xf32>
    %143 = vector.broadcast %140 : vector<8x1xf32> to vector<8x256xf32>
    %144 = arith.addf %142, %143 : vector<8x256xf32>
    %145 = arith.truncf %144 : vector<8x256xf32> to vector<8x256xbf16>
    %c0_82 = arith.constant 0 : index
    %c128_83 = arith.constant 128 : index
    %146 = vector.load %arg11[%c0_82, %c128_83] : memref<8x512xbf16, #tpu.memory_space<vmem>>, vector<8x256xbf16>
    tpu.vector_store %arg11[%c0_82, %c128_83], %145 {strides = array<i32>} : memref<8x512xbf16, #tpu.memory_space<vmem>>, vector<8x256xbf16>,
    %cst_84 = arith.constant 0.000000e+00 : f32
    %147 = vector.broadcast %cst_84 : f32 to vector<8x256xf32>
    %c0_85 = arith.constant 0 : index
    %c111_86 = arith.constant 111 : index
    %148 = vector.load %arg11[%c0_85, %c111_86] : memref<8x512xbf16, #tpu.memory_space<vmem>>, vector<8x256xbf16>
    %cst_87 = arith.constant 0.000000e+00 : bf16
    %149 = vector.broadcast %cst_87 : bf16 to vector<8x256xbf16>
    %150 = arith.select %21, %148, %149 : vector<8x256xi1>, vector<8x256xbf16>
    %c0_88 = arith.constant 0 : index
    %c0_89 = arith.constant 0 : index
    %c0_90 = arith.constant 0 : index
    %151 = vector.load %arg7[%c0_88, %c0_89, %c0_90] : memref<9x8x8xbf16, #tpu.memory_space<vmem>>, vector<1x8x8xbf16>
    %152 = vector.shape_cast %151 : vector<1x8x8xbf16> to vector<8x8xbf16>
    %cst_91 = arith.constant dense<0.000000e+00> : vector<8x256xf32>
    %153 = tpu.matmul %152, %150, %cst_91 {dimension_numbers = #tpu.dot_dimension_numbers<[1], [0], [0], [1], [0, 0, 1, 1], [], []>} : vector<8x8xbf16>, vector<8x256xbf16>, vector<8x256xf32> -> vector<8x256xf32>
    %154 = arith.addf %147, %153 : vector<8x256xf32>
    %c0_92 = arith.constant 0 : index
    %c112_93 = arith.constant 112 : index
    %155 = vector.load %arg11[%c0_92, %c112_93] : memref<8x512xbf16, #tpu.memory_space<vmem>>, vector<8x256xbf16>
    %c1_94 = arith.constant 1 : index
    %c0_95 = arith.constant 0 : index
    %c0_96 = arith.constant 0 : index
    %156 = vector.load %arg7[%c1_94, %c0_95, %c0_96] : memref<9x8x8xbf16, #tpu.memory_space<vmem>>, vector<1x8x8xbf16>
    %157 = vector.shape_cast %156 : vector<1x8x8xbf16> to vector<8x8xbf16>
    %cst_97 = arith.constant dense<0.000000e+00> : vector<8x256xf32>
    %158 = tpu.matmul %157, %155, %cst_97 {dimension_numbers = #tpu.dot_dimension_numbers<[1], [0], [0], [1], [0, 0, 1, 1], [], []>} : vector<8x8xbf16>, vector<8x256xbf16>, vector<8x256xf32> -> vector<8x256xf32>
    %159 = arith.addf %154, %158 : vector<8x256xf32>
    %c0_98 = arith.constant 0 : index
    %c113_99 = arith.constant 113 : index
    %160 = vector.load %arg11[%c0_98, %c113_99] : memref<8x512xbf16, #tpu.memory_space<vmem>>, vector<8x256xbf16>
    %cst_100 = arith.constant 0.000000e+00 : bf16
    %161 = vector.broadcast %cst_100 : bf16 to vector<8x256xbf16>
    %162 = arith.select %23, %160, %161 : vector<8x256xi1>, vector<8x256xbf16>
    %c2_101 = arith.constant 2 : index
    %c0_102 = arith.constant 0 : index
    %c0_103 = arith.constant 0 : index
    %163 = vector.load %arg7[%c2_101, %c0_102, %c0_103] : memref<9x8x8xbf16, #tpu.memory_space<vmem>>, vector<1x8x8xbf16>
    %164 = vector.shape_cast %163 : vector<1x8x8xbf16> to vector<8x8xbf16>
    %cst_104 = arith.constant dense<0.000000e+00> : vector<8x256xf32>
    %165 = tpu.matmul %164, %162, %cst_104 {dimension_numbers = #tpu.dot_dimension_numbers<[1], [0], [0], [1], [0, 0, 1, 1], [], []>} : vector<8x8xbf16>, vector<8x256xbf16>, vector<8x256xf32> -> vector<8x256xf32>
    %166 = arith.addf %159, %165 : vector<8x256xf32>
    %c0_105 = arith.constant 0 : index
    %c127_106 = arith.constant 127 : index
    %167 = vector.load %arg11[%c0_105, %c127_106] : memref<8x512xbf16, #tpu.memory_space<vmem>>, vector<8x256xbf16>
    %cst_107 = arith.constant 0.000000e+00 : bf16
    %168 = vector.broadcast %cst_107 : bf16 to vector<8x256xbf16>
    %169 = arith.select %21, %167, %168 : vector<8x256xi1>, vector<8x256xbf16>
    %c3_108 = arith.constant 3 : index
    %c0_109 = arith.constant 0 : index
    %c0_110 = arith.constant 0 : index
    %170 = vector.load %arg7[%c3_108, %c0_109, %c0_110] : memref<9x8x8xbf16, #tpu.memory_space<vmem>>, vector<1x8x8xbf16>
    %171 = vector.shape_cast %170 : vector<1x8x8xbf16> to vector<8x8xbf16>
    %cst_111 = arith.constant dense<0.000000e+00> : vector<8x256xf32>
    %172 = tpu.matmul %171, %169, %cst_111 {dimension_numbers = #tpu.dot_dimension_numbers<[1], [0], [0], [1], [0, 0, 1, 1], [], []>} : vector<8x8xbf16>, vector<8x256xbf16>, vector<8x256xf32> -> vector<8x256xf32>
    %173 = arith.addf %166, %172 : vector<8x256xf32>
    %c0_112 = arith.constant 0 : index
    %c128_113 = arith.constant 128 : index
    %174 = vector.load %arg11[%c0_112, %c128_113] : memref<8x512xbf16, #tpu.memory_space<vmem>>, vector<8x256xbf16>
    %c4_114 = arith.constant 4 : index
    %c0_115 = arith.constant 0 : index
    %c0_116 = arith.constant 0 : index
    %175 = vector.load %arg7[%c4_114, %c0_115, %c0_116] : memref<9x8x8xbf16, #tpu.memory_space<vmem>>, vector<1x8x8xbf16>
    %176 = vector.shape_cast %175 : vector<1x8x8xbf16> to vector<8x8xbf16>
    %cst_117 = arith.constant dense<0.000000e+00> : vector<8x256xf32>
    %177 = tpu.matmul %176, %174, %cst_117 {dimension_numbers = #tpu.dot_dimension_numbers<[1], [0], [0], [1], [0, 0, 1, 1], [], []>} : vector<8x8xbf16>, vector<8x256xbf16>, vector<8x256xf32> -> vector<8x256xf32>
    %178 = arith.addf %173, %177 : vector<8x256xf32>
    %c0_118 = arith.constant 0 : index
    %c129_119 = arith.constant 129 : index
    %179 = vector.load %arg11[%c0_118, %c129_119] : memref<8x512xbf16, #tpu.memory_space<vmem>>, vector<8x256xbf16>
    %cst_120 = arith.constant 0.000000e+00 : bf16
    %180 = vector.broadcast %cst_120 : bf16 to vector<8x256xbf16>
    %181 = arith.select %23, %179, %180 : vector<8x256xi1>, vector<8x256xbf16>
    %c5_121 = arith.constant 5 : index
    %c0_122 = arith.constant 0 : index
    %c0_123 = arith.constant 0 : index
    %182 = vector.load %arg7[%c5_121, %c0_122, %c0_123] : memref<9x8x8xbf16, #tpu.memory_space<vmem>>, vector<1x8x8xbf16>
    %183 = vector.shape_cast %182 : vector<1x8x8xbf16> to vector<8x8xbf16>
    %cst_124 = arith.constant dense<0.000000e+00> : vector<8x256xf32>
    %184 = tpu.matmul %183, %181, %cst_124 {dimension_numbers = #tpu.dot_dimension_numbers<[1], [0], [0], [1], [0, 0, 1, 1], [], []>} : vector<8x8xbf16>, vector<8x256xbf16>, vector<8x256xf32> -> vector<8x256xf32>
    %185 = arith.addf %178, %184 : vector<8x256xf32>
    %c0_125 = arith.constant 0 : index
    %c143_126 = arith.constant 143 : index
    %186 = vector.load %arg11[%c0_125, %c143_126] : memref<8x512xbf16, #tpu.memory_space<vmem>>, vector<8x256xbf16>
    %cst_127 = arith.constant 0.000000e+00 : bf16
    %187 = vector.broadcast %cst_127 : bf16 to vector<8x256xbf16>
    %188 = arith.select %21, %186, %187 : vector<8x256xi1>, vector<8x256xbf16>
    %c6_128 = arith.constant 6 : index
    %c0_129 = arith.constant 0 : index
    %c0_130 = arith.constant 0 : index
    %189 = vector.load %arg7[%c6_128, %c0_129, %c0_130] : memref<9x8x8xbf16, #tpu.memory_space<vmem>>, vector<1x8x8xbf16>
    %190 = vector.shape_cast %189 : vector<1x8x8xbf16> to vector<8x8xbf16>
    %cst_131 = arith.constant dense<0.000000e+00> : vector<8x256xf32>
    %191 = tpu.matmul %190, %188, %cst_131 {dimension_numbers = #tpu.dot_dimension_numbers<[1], [0], [0], [1], [0, 0, 1, 1], [], []>} : vector<8x8xbf16>, vector<8x256xbf16>, vector<8x256xf32> -> vector<8x256xf32>
    %192 = arith.addf %185, %191 : vector<8x256xf32>
    %c0_132 = arith.constant 0 : index
    %c144_133 = arith.constant 144 : index
    %193 = vector.load %arg11[%c0_132, %c144_133] : memref<8x512xbf16, #tpu.memory_space<vmem>>, vector<8x256xbf16>
    %c7_134 = arith.constant 7 : index
    %c0_135 = arith.constant 0 : index
    %c0_136 = arith.constant 0 : index
    %194 = vector.load %arg7[%c7_134, %c0_135, %c0_136] : memref<9x8x8xbf16, #tpu.memory_space<vmem>>, vector<1x8x8xbf16>
    %195 = vector.shape_cast %194 : vector<1x8x8xbf16> to vector<8x8xbf16>
    %cst_137 = arith.constant dense<0.000000e+00> : vector<8x256xf32>
    %196 = tpu.matmul %195, %193, %cst_137 {dimension_numbers = #tpu.dot_dimension_numbers<[1], [0], [0], [1], [0, 0, 1, 1], [], []>} : vector<8x8xbf16>, vector<8x256xbf16>, vector<8x256xf32> -> vector<8x256xf32>
    %197 = arith.addf %192, %196 : vector<8x256xf32>
    %c0_138 = arith.constant 0 : index
    %c145_139 = arith.constant 145 : index
    %198 = vector.load %arg11[%c0_138, %c145_139] : memref<8x512xbf16, #tpu.memory_space<vmem>>, vector<8x256xbf16>
    %cst_140 = arith.constant 0.000000e+00 : bf16
    %199 = vector.broadcast %cst_140 : bf16 to vector<8x256xbf16>
    %200 = arith.select %23, %198, %199 : vector<8x256xi1>, vector<8x256xbf16>
    %c8_141 = arith.constant 8 : index
    %c0_142 = arith.constant 0 : index
    %c0_143 = arith.constant 0 : index
    %201 = vector.load %arg7[%c8_141, %c0_142, %c0_143] : memref<9x8x8xbf16, #tpu.memory_space<vmem>>, vector<1x8x8xbf16>
    %202 = vector.shape_cast %201 : vector<1x8x8xbf16> to vector<8x8xbf16>
    %cst_144 = arith.constant dense<0.000000e+00> : vector<8x256xf32>
    %203 = tpu.matmul %202, %200, %cst_144 {dimension_numbers = #tpu.dot_dimension_numbers<[1], [0], [0], [1], [0, 0, 1, 1], [], []>} : vector<8x8xbf16>, vector<8x256xbf16>, vector<8x256xf32> -> vector<8x256xf32>
    %204 = arith.addf %197, %203 : vector<8x256xf32>
    %c0_145 = arith.constant 0 : index
    %c0_146 = arith.constant 0 : index
    %205 = vector.load %arg9[%c0_145, %c0_146] : memref<8x1xf32, #tpu.memory_space<vmem>>, vector<8x1xf32>
    %206 = vector.broadcast %205 : vector<8x1xf32> to vector<8x256xf32>
    %207 = arith.addf %204, %206 : vector<8x256xf32>
    %cst_147 = arith.constant 0.000000e+00 : f32
    %208 = vector.broadcast %cst_147 : f32 to vector<8x256xf32>
    %209 = arith.maximumf %207, %208 : vector<8x256xf32>
    %c0_148 = arith.constant 0 : index
    %c0_149 = arith.constant 0 : index
    %c0_150 = arith.constant 0 : index
    %210 = vector.load %arg10[%c0_148, %c0_149, %c0_150] : memref<1x8x256xf32, #tpu.memory_space<vmem>>, vector<1x8x256xf32>
    %211 = vector.shape_cast %210 : vector<1x8x256xf32> to vector<8x256xf32>
    %212 = vector.shape_cast %209 : vector<8x256xf32> to vector<1x8x256xf32>
    tpu.vector_store %arg10[%c0_148, %c0_149, %c0_150], %212 {strides = array<i32>} : memref<1x8x256xf32, #tpu.memory_space<vmem>>, vector<1x8x256xf32>,
    return
  }
  func.func @transform_0(%arg0: i32) -> (i32, i32, i32) {
    %c0_i32 = arith.constant 0 : i32
    %c0_i32_0 = arith.constant 0 : i32
    %c0_i32_1 = arith.constant 0 : i32
    return %arg0, %c0_i32, %c0_i32_0 : i32, i32, i32
  }
  func.func @transform_1(%arg0: i32) -> (i32, i32, i32) {
    %c0_i32 = arith.constant 0 : i32
    %c0_i32_0 = arith.constant 0 : i32
    %c0_i32_1 = arith.constant 0 : i32
    return %arg0, %c0_i32, %c0_i32_0 : i32, i32, i32
  }
  func.func @transform_2(%arg0: i32) -> (i32, i32, i32) {
    %c0_i32 = arith.constant 0 : i32
    %c0_i32_0 = arith.constant 0 : i32
    %c0_i32_1 = arith.constant 0 : i32
    return %arg0, %c0_i32, %c0_i32_0 : i32, i32, i32
  }
  func.func @transform_3(%arg0: i32) -> (i32, i32, i32) {
    %c0_i32 = arith.constant 0 : i32
    %c0_i32_0 = arith.constant 0 : i32
    %c0_i32_1 = arith.constant 0 : i32
    return %arg0, %c0_i32, %c0_i32_0 : i32, i32, i32
  }
  func.func @transform_4(%arg0: i32) -> (i32, i32, i32) {
    %c0_i32 = arith.constant 0 : i32
    %c0_i32_0 = arith.constant 0 : i32
    %c0_i32_1 = arith.constant 0 : i32
    return %arg0, %c0_i32, %c0_i32_0 : i32, i32, i32
  }
  func.func @transform_5(%arg0: i32) -> (i32, i32, i32) {
    %c0_i32 = arith.constant 0 : i32
    %c0_i32_0 = arith.constant 0 : i32
    %c0_i32_1 = arith.constant 0 : i32
    %c0_i32_2 = arith.constant 0 : i32
    return %c0_i32, %c0_i32_0, %c0_i32_1 : i32, i32, i32
  }
  func.func @transform_6(%arg0: i32) -> (i32, i32, i32) {
    %c0_i32 = arith.constant 0 : i32
    %c0_i32_0 = arith.constant 0 : i32
    %c0_i32_1 = arith.constant 0 : i32
    %c0_i32_2 = arith.constant 0 : i32
    return %c0_i32, %c0_i32_0, %c0_i32_1 : i32, i32, i32
  }
  func.func @transform_7(%arg0: i32) -> (i32, i32) {
    %c0_i32 = arith.constant 0 : i32
    %c0_i32_0 = arith.constant 0 : i32
    %c0_i32_1 = arith.constant 0 : i32
    return %c0_i32, %c0_i32_0 : i32, i32
  }
  func.func @transform_8(%arg0: i32) -> (i32, i32) {
    %c0_i32 = arith.constant 0 : i32
    %c0_i32_0 = arith.constant 0 : i32
    %c0_i32_1 = arith.constant 0 : i32
    return %c0_i32, %c0_i32_0 : i32, i32
  }
  func.func @transform_9(%arg0: i32) -> (i32, i32, i32) {
    %c0_i32 = arith.constant 0 : i32
    %c0_i32_0 = arith.constant 0 : i32
    %c0_i32_1 = arith.constant 0 : i32
    return %arg0, %c0_i32, %c0_i32_0 : i32, i32, i32
  }
}

</mosaic_0001>

<llo_original>
// kernel: low_block_forward.1
$region0: #{low_block_forward.1}
  #allocation0 [shape = 'u32[]', space=smem, size = 0x4, offset = 0x4, fixed_abs, tag = 'smem constant byte address 0x4 - core index']
  #allocation1 [shape = 'u32[72,128]{1,0:T(1,128)}', space=vmem, size = 0x9000, scoped, tag = 'internal scratch']
  #allocation2 [shape = 'bf16[8,512]{1,0:T(8,128)(2,1)}', space=vmem, size = 0x2000, scoped, tag = 'scratch operand']
  %s0 = inlined_call_operand.vmem [shape: f32[2,8,256], index: 0, kind: input, shape index: {}]
  %s1 = inlined_call_operand.vmem [shape: f32[2,8,1], index: 1, kind: input, shape index: {}]
  %s2 = inlined_call_operand.vmem [shape: f32[2,8,1], index: 2, kind: input, shape index: {}]
  %s3 = inlined_call_operand.vmem [shape: f32[2,8,1], index: 3, kind: input, shape index: {}]
  %s4 = inlined_call_operand.vmem [shape: f32[2,8,1], index: 4, kind: input, shape index: {}]
  %s5 = inlined_call_operand.vmem [shape: bf16[9,8,8], index: 5, kind: input, shape index: {}]
  %s6 = inlined_call_operand.vmem [shape: bf16[9,8,8], index: 6, kind: input, shape index: {}]
  %s7 = inlined_call_operand.vmem [shape: f32[8,1], index: 7, kind: input, shape index: {}]
  %s8 = inlined_call_operand.vmem [shape: f32[8,1], index: 8, kind: input, shape index: {}]
  %s9 = inlined_call_operand.vmem [shape: f32[2,8,256], index: 9, kind: output, shape index: {}]
  %s10 = sld [smem:[#allocation0]]
  $region69: #{low_block_forward.1} parent=0
    _
  %s12 = ssub.s32 1, %s10
  %s13 = scalar_select 0, %s12, %s10
  loop: start=0, step=1, limit=4
  $region2: #{low_block_forward.1} parent=0 // loop_pre_header
    _
  $region3: #{low_block_forward.1} parent=0 // loop_header
    %s15 = sphi 0, %s19
    %p16 = scmp.ge.s32.totalorder %s15, 4
    %s25 = sphi 0, %s27
    %s28 = sphi 0, %s25
    %s29 = sphi 0, %s28
    %s45 = sphi 0, %s29
    %s51 = sphi 0, %s53
    %s54 = sphi 0, %s51
    %s55 = sphi 0, %s54
    %s71 = sphi 0, %s55
    %s77 = sphi 0, %s79
    %s80 = sphi 0, %s77
    %s81 = sphi 0, %s80
    %s97 = sphi 0, %s81
    %s103 = sphi 0, %s105
    %s106 = sphi 0, %s103
    %s107 = sphi 0, %s106
    %s123 = sphi 0, %s107
    %s129 = sphi 0, %s131
    %s132 = sphi 0, %s129
    %s133 = sphi 0, %s132
    %s149 = sphi 0, %s133
    %s153 = sphi 0, %s153
    %s155 = sphi 0, %s153
    %s156 = sphi 0, %s155
    %s170 = sphi 0, %s156
    %s174 = sphi 0, %s174
    %s176 = sphi 0, %s174
    %s177 = sphi 0, %s176
    %s191 = sphi 0, %s177
    %s195 = sphi 0, %s195
    %s197 = sphi 0, %s195
    %s198 = sphi 0, %s197
    %s212 = sphi 0, %s198
    %s216 = sphi 0, %s216
    %s218 = sphi 0, %s216
    %s219 = sphi 0, %s218
    %s233 = sphi 0, %s219
    %s239 = sphi 0, %s241
    %s242 = sphi 0, %s239
    %s243 = sphi 0, %s242
    %s259 = sphi 0, %s243
  $region4: #{low_block_forward.1} parent=0 // loop_header_branch
    %18 = sbr.rel (%p16) target = $region8
  $region5: #{low_block_forward.1} parent=0 // loop_body
    %s20 = ssub.s32 %s15, 1
    %s21 = ssub.s32 %s15, 2
    %s22 = sadd.s32 %s15, 1
    %s23 = ssub.s32 %s15, %s22
    %p24 = scmp.eq.s32.totalorder %s23, 0
    %s26 = sadd.s32 %s25, 1
    %s27 = scalar_select %p24, %s25, %s26
    %p30 = pneg %p24
    %p31 = scmp.eq.s32.totalorder %s15, 1
    %p32 = por %p30, %p31
    %p33 = scmp.ne.s32.totalorder %s25, %s28
    %p34 = scmp.eq.s32.totalorder %s15, 0
    %p35 = por %p33, %p34
    %p36 = scmp.ne.s32.totalorder %s25, %s28
    %p37 = scmp.eq.s32.totalorder %s20, 1
    %p38 = por %p36, %p37
    %p39 = scmp.ne.s32.totalorder %s28, %s29
    %p40 = scmp.eq.s32.totalorder %s20, 0
    %p41 = por %p39, %p40
    %p42 = scmp.ne.s32.totalorder %s28, %s29
    %p43 = scmp.eq.s32.totalorder %s21, 1
    %p44 = por %p42, %p43
    %p46 = scmp.ne.s32.totalorder %s29, %s45
    %p47 = scmp.eq.s32.totalorder %s21, 0
    %p48 = por %p46, %p47
    %s49 = ssub.s32 %s15, %s22
    %p50 = scmp.eq.s32.totalorder %s49, 0
    %s52 = sadd.s32 %s51, 1
    %s53 = scalar_select %p50, %s51, %s52
    %p56 = pneg %p50
    %p57 = scmp.eq.s32.totalorder %s15, 1
    %p58 = por %p56, %p57
    %p59 = scmp.ne.s32.totalorder %s51, %s54
    %p60 = scmp.eq.s32.totalorder %s15, 0
    %p61 = por %p59, %p60
    %p62 = scmp.ne.s32.totalorder %s51, %s54
    %p63 = scmp.eq.s32.totalorder %s20, 1
    %p64 = por %p62, %p63
    %p65 = scmp.ne.s32.totalorder %s54, %s55
    %p66 = scmp.eq.s32.totalorder %s20, 0
    %p67 = por %p65, %p66
    %p68 = scmp.ne.s32.totalorder %s54, %s55
    %p69 = scmp.eq.s32.totalorder %s21, 1
    %p70 = por %p68, %p69
    %p72 = scmp.ne.s32.totalorder %s55, %s71
    %p73 = scmp.eq.s32.totalorder %s21, 0
    %p74 = por %p72, %p73
    %s75 = ssub.s32 %s15, %s22
    %p76 = scmp.eq.s32.totalorder %s75, 0
    %s78 = sadd.s32 %s77, 1
    %s79 = scalar_select %p76, %s77, %s78
    %p82 = pneg %p76
    %p83 = scmp.eq.s32.totalorder %s15, 1
    %p84 = por %p82, %p83
    %p85 = scmp.ne.s32.totalorder %s77, %s80
    %p86 = scmp.eq.s32.totalorder %s15, 0
    %p87 = por %p85, %p86
    %p88 = scmp.ne.s32.totalorder %s77, %s80
    %p89 = scmp.eq.s32.totalorder %s20, 1
    %p90 = por %p88, %p89
    %p91 = scmp.ne.s32.totalorder %s80, %s81
    %p92 = scmp.eq.s32.totalorder %s20, 0
    %p93 = por %p91, %p92
    %p94 = scmp.ne.s32.totalorder %s80, %s81
    %p95 = scmp.eq.s32.totalorder %s21, 1
    %p96 = por %p94, %p95
    %p98 = scmp.ne.s32.totalorder %s81, %s97
    %p99 = scmp.eq.s32.totalorder %s21, 0
    %p100 = por %p98, %p99
    %s101 = ssub.s32 %s15, %s22
    %p102 = scmp.eq.s32.totalorder %s101, 0
    %s104 = sadd.s32 %s103, 1
    %s105 = scalar_select %p102, %s103, %s104
    %p108 = pneg %p102
    %p109 = scmp.eq.s32.totalorder %s15, 1
    %p110 = por %p108, %p109
    %p111 = scmp.ne.s32.totalorder %s103, %s106
    %p112 = scmp.eq.s32.totalorder %s15, 0
    %p113 = por %p111, %p112
    %p114 = scmp.ne.s32.totalorder %s103, %s106
    %p115 = scmp.eq.s32.totalorder %s20, 1
    %p116 = por %p114, %p115
    %p117 = scmp.ne.s32.totalorder %s106, %s107
    %p118 = scmp.eq.s32.totalorder %s20, 0
    %p119 = por %p117, %p118
    %p120 = scmp.ne.s32.totalorder %s106, %s107
    %p121 = scmp.eq.s32.totalorder %s21, 1
    %p122 = por %p120, %p121
    %p124 = scmp.ne.s32.totalorder %s107, %s123
    %p125 = scmp.eq.s32.totalorder %s21, 0
    %p126 = por %p124, %p125
    %s127 = ssub.s32 %s15, %s22
    %p128 = scmp.eq.s32.totalorder %s127, 0
    %s130 = sadd.s32 %s129, 1
    %s131 = scalar_select %p128, %s129, %s130
    %p134 = pneg %p128
    %p135 = scmp.eq.s32.totalorder %s15, 1
    %p136 = por %p134, %p135
    %p137 = scmp.ne.s32.totalorder %s129, %s132
    %p138 = scmp.eq.s32.totalorder %s15, 0
    %p139 = por %p137, %p138
    %p140 = scmp.ne.s32.totalorder %s129, %s132
    %p141 = scmp.eq.s32.totalorder %s20, 1
    %p142 = por %p140, %p141
    %p143 = scmp.ne.s32.totalorder %s132, %s133
    %p144 = scmp.eq.s32.totalorder %s20, 0
    %p145 = por %p143, %p144
    %p146 = scmp.ne.s32.totalorder %s132, %s133
    %p147 = scmp.eq.s32.totalorder %s21, 1
    %p148 = por %p146, %p147
    %p150 = scmp.ne.s32.totalorder %s133, %s149
    %p151 = scmp.eq.s32.totalorder %s21, 0
    %p152 = por %p150, %p151
    %s154 = sadd.s32 %s153, 1
    %p157 = scmp.eq.s32.totalorder %s15, 1
    %p158 = scmp.ne.s32.totalorder %s153, %s155
    %p159 = scmp.eq.s32.totalorder %s15, 0
    %p160 = por %p158, %p159
    %p161 = scmp.ne.s32.totalorder %s153, %s155
    %p162 = scmp.eq.s32.totalorder %s20, 1
    %p163 = por %p161, %p162
    %p164 = scmp.ne.s32.totalorder %s155, %s156
    %p165 = scmp.eq.s32.totalorder %s20, 0
    %p166 = por %p164, %p165
    %p167 = scmp.ne.s32.totalorder %s155, %s156
    %p168 = scmp.eq.s32.totalorder %s21, 1
    %p169 = por %p167, %p168
    %p171 = scmp.ne.s32.totalorder %s156, %s170
    %p172 = scmp.eq.s32.totalorder %s21, 0
    %p173 = por %p171, %p172
    %s175 = sadd.s32 %s174, 1
    %p178 = scmp.eq.s32.totalorder %s15, 1
    %p179 = scmp.ne.s32.totalorder %s174, %s176
    %p180 = scmp.eq.s32.totalorder %s15, 0
    %p181 = por %p179, %p180
    %p182 = scmp.ne.s32.totalorder %s174, %s176
    %p183 = scmp.eq.s32.totalorder %s20, 1
    %p184 = por %p182, %p183
    %p185 = scmp.ne.s32.totalorder %s176, %s177
    %p186 = scmp.eq.s32.totalorder %s20, 0
    %p187 = por %p185, %p186
    %p188 = scmp.ne.s32.totalorder %s176, %s177
    %p189 = scmp.eq.s32.totalorder %s21, 1
    %p190 = por %p188, %p189
    %p192 = scmp.ne.s32.totalorder %s177, %s191
    %p193 = scmp.eq.s32.totalorder %s21, 0
    %p194 = por %p192, %p193
    %s196 = sadd.s32 %s195, 1
    %p199 = scmp.eq.s32.totalorder %s15, 1
    %p200 = scmp.ne.s32.totalorder %s195, %s197
    %p201 = scmp.eq.s32.totalorder %s15, 0
    %p202 = por %p200, %p201
    %p203 = scmp.ne.s32.totalorder %s195, %s197
    %p204 = scmp.eq.s32.totalorder %s20, 1
    %p205 = por %p203, %p204
    %p206 = scmp.ne.s32.totalorder %s197, %s198
    %p207 = scmp.eq.s32.totalorder %s20, 0
    %p208 = por %p206, %p207
    %p209 = scmp.ne.s32.totalorder %s197, %s198
    %p210 = scmp.eq.s32.totalorder %s21, 1
    %p211 = por %p209, %p210
    %p213 = scmp.ne.s32.totalorder %s198, %s212
    %p214 = scmp.eq.s32.totalorder %s21, 0
    %p215 = por %p213, %p214
    %s217 = sadd.s32 %s216, 1
    %p220 = scmp.eq.s32.totalorder %s15, 1
    %p221 = scmp.ne.s32.totalorder %s216, %s218
    %p222 = scmp.eq.s32.totalorder %s15, 0
    %p223 = por %p221, %p222
    %p224 = scmp.ne.s32.totalorder %s216, %s218
    %p225 = scmp.eq.s32.totalorder %s20, 1
    %p226 = por %p224, %p225
    %p227 = scmp.ne.s32.totalorder %s218, %s219
    %p228 = scmp.eq.s32.totalorder %s20, 0
    %p229 = por %p227, %p228
    %p230 = scmp.ne.s32.totalorder %s218, %s219
    %p231 = scmp.eq.s32.totalorder %s21, 1
    %p232 = por %p230, %p231
    %p234 = scmp.ne.s32.totalorder %s219, %s233
    %p235 = scmp.eq.s32.totalorder %s21, 0
    %p236 = por %p234, %p235
    %s237 = ssub.s32 %s15, %s22
    %p238 = scmp.eq.s32.totalorder %s237, 0
    %s240 = sadd.s32 %s239, 1
    %s241 = scalar_select %p238, %s239, %s240
    %p244 = pneg %p238
    %p245 = scmp.eq.s32.totalorder %s15, 1
    %p246 = por %p244, %p245
    %p247 = scmp.ne.s32.totalorder %s239, %s242
    %p248 = scmp.eq.s32.totalorder %s15, 0
    %p249 = por %p247, %p248
    %p250 = scmp.ne.s32.totalorder %s239, %s242
    %p251 = scmp.eq.s32.totalorder %s20, 1
    %p252 = por %p250, %p251
    %p253 = scmp.ne.s32.totalorder %s242, %s243
    %p254 = scmp.eq.s32.totalorder %s20, 0
    %p255 = por %p253, %p254
    %p256 = scmp.ne.s32.totalorder %s242, %s243
    %p257 = scmp.eq.s32.totalorder %s21, 1
    %p258 = por %p256, %p257
    %p260 = scmp.ne.s32.totalorder %s243, %s259
    %p261 = scmp.eq.s32.totalorder %s21, 0
    %p262 = por %p260, %p261
    %p263 = scmp.le.s32.totalorder 1, %s15
    %p264 = scmp.lt.s32.totalorder %s15, 3
    %p265 = pnand %p263, %p264
    %p266 = pneg %p265
    // Predicated region
    $region9: #{low_block_forward.1} parent=5 // pred_check
      _
    $region10: #{low_block_forward.1} parent=5 // pred_check_branch
      %268 = sbr.rel (%p265) target = $region12
    $region11: #{low_block_forward.1} parent=5 // pred_region
      %s269 = ssub.s32 %s15, 1
      // Predicated region
      $region13: #{low_block_forward.1} parent=11 // pred_check
        %p270 = pneg %p166
      $region14: #{low_block_forward.1} parent=11 // pred_check_branch
        %272 = sbr.rel (%p270) target = $region16
      $region15: #{low_block_forward.1} parent=11 // pred_region
        _
      $region16: #{low_block_forward.1} parent=11 // pred_fallthru
        _
      // Predicated region
      $region17: #{low_block_forward.1} parent=11 // pred_check
        %p273 = pneg %p187
      $region18: #{low_block_forward.1} parent=11 // pred_check_branch
        %275 = sbr.rel (%p273) target = $region20
      $region19: #{low_block_forward.1} parent=11 // pred_region
        _
      $region20: #{low_block_forward.1} parent=11 // pred_fallthru
        _
      // Predicated region
      $region21: #{low_block_forward.1} parent=11 // pred_check
        %p276 = pneg %p208
      $region22: #{low_block_forward.1} parent=11 // pred_check_branch
        %278 = sbr.rel (%p276) target = $region24
      $region23: #{low_block_forward.1} parent=11 // pred_region
        _
      $region24: #{low_block_forward.1} parent=11 // pred_fallthru
        _
      // Predicated region
      $region25: #{low_block_forward.1} parent=11 // pred_check
        %p279 = pneg %p229
      $region26: #{low_block_forward.1} parent=11 // pred_check_branch
        %281 = sbr.rel (%p279) target = $region28
      $region27: #{low_block_forward.1} parent=11 // pred_region
        _
      $region28: #{low_block_forward.1} parent=11 // pred_fallthru
        _
    $region12: #{low_block_forward.1} parent=5 // pred_fallthru
      _
    %p282 = scmp.lt.s32.totalorder %s15, 2
    // Predicated region
    $region29: #{low_block_forward.1} parent=5 // pred_check
      %p283 = pneg %p282
    $region30: #{low_block_forward.1} parent=5 // pred_check_branch
      %285 = sbr.rel (%p283) target = $region32
    $region31: #{low_block_forward.1} parent=5 // pred_region
      // Predicated region
      $region33: #{low_block_forward.1} parent=31 // pred_check
        %p286 = pneg %p35
      $region34: #{low_block_forward.1} parent=31 // pred_check_branch
        %288 = sbr.rel (%p286) target = $region36
      $region35: #{low_block_forward.1} parent=31 // pred_region
        %p289 = scmp.lt.s32.totalorder %s15, 1
        %s290 = scalar_select %p289, %s15, 1
        %s291 = smul.addr %s290, 2
        %s292 = smul.addr %s291, 8
        %s293 = scalar_lea.vmem %s0, %s292
      $region36: #{low_block_forward.1} parent=31 // pred_fallthru
        _
      // Predicated region
      $region37: #{low_block_forward.1} parent=31 // pred_check
        %p294 = pneg %p61
      $region38: #{low_block_forward.1} parent=31 // pred_check_branch
        %296 = sbr.rel (%p294) target = $region40
      $region39: #{low_block_forward.1} parent=31 // pred_region
        %p297 = scmp.lt.s32.totalorder %s15, 1
        %s298 = scalar_select %p297, %s15, 1
        %s299 = smul.addr %s298, 8
        %s300 = scalar_lea.vmem %s1, %s299
      $region40: #{low_block_forward.1} parent=31 // pred_fallthru
        _
      // Predicated region
      $region41: #{low_block_forward.1} parent=31 // pred_check
        %p301 = pneg %p87
      $region42: #{low_block_forward.1} parent=31 // pred_check_branch
        %303 = sbr.rel (%p301) target = $region44
      $region43: #{low_block_forward.1} parent=31 // pred_region
        %p304 = scmp.lt.s32.totalorder %s15, 1
        %s305 = scalar_select %p304, %s15, 1
        %s306 = smul.addr %s305, 8
        %s307 = scalar_lea.vmem %s2, %s306
      $region44: #{low_block_forward.1} parent=31 // pred_fallthru
        _
      // Predicated region
      $region45: #{low_block_forward.1} parent=31 // pred_check
        %p308 = pneg %p113
      $region46: #{low_block_forward.1} parent=31 // pred_check_branch
        %310 = sbr.rel (%p308) target = $region48
      $region47: #{low_block_forward.1} parent=31 // pred_region
        %p311 = scmp.lt.s32.totalorder %s15, 1
        %s312 = scalar_select %p311, %s15, 1
        %s313 = smul.addr %s312, 8
        %s314 = scalar_lea.vmem %s3, %s313
      $region48: #{low_block_forward.1} parent=31 // pred_fallthru
        _
      // Predicated region
      $region49: #{low_block_forward.1} parent=31 // pred_check
        %p315 = pneg %p139
      $region50: #{low_block_forward.1} parent=31 // pred_check_branch
        %317 = sbr.rel (%p315) target = $region52
      $region51: #{low_block_forward.1} parent=31 // pred_region
        %p318 = scmp.lt.s32.totalorder %s15, 1
        %s319 = scalar_select %p318, %s15, 1
        %s320 = smul.addr %s319, 8
        %s321 = scalar_lea.vmem %s4, %s320
      $region52: #{low_block_forward.1} parent=31 // pred_fallthru
        _
    $region32: #{low_block_forward.1} parent=5 // pred_fallthru
      _
    %p322 = scmp.le.s32.totalorder 1, %s15
    %p323 = scmp.lt.s32.totalorder %s15, 3
    %p324 = pnand %p322, %p323
    %p325 = pneg %p324
    // Predicated region
    $region53: #{low_block_forward.1} parent=5 // pred_check
      _
    $region54: #{low_block_forward.1} parent=5 // pred_check_branch
      %327 = sbr.rel (%p324) target = $region56
    $region55: #{low_block_forward.1} parent=5 // pred_region
      %s328 = ssub.s32 %s15, 1
      %p329 = scmp.lt.s32.totalorder %s20, 1
      %s330 = scalar_select %p329, %s20, 1
      %s331 = smul.addr %s330, 2
      %s332 = smul.addr %s331, 8
      %s333 = scalar_lea.vmem %s0, %s332
      %p334 = pneg %p41
      %p335 = pneg %p38
      %p336 = scmp.lt.s32.totalorder %s20, 1
      %s337 = scalar_select %p336, %s20, 1
      %s338 = smul.addr %s337, 8
      %s339 = scalar_lea.vmem %s1, %s338
      %p340 = pneg %p67
      %p341 = pneg %p64
      %p342 = scmp.lt.s32.totalorder %s20, 1
      %s343 = scalar_select %p342, %s20, 1
      %s344 = smul.addr %s343, 8
      %s345 = scalar_lea.vmem %s2, %s344
      %p346 = pneg %p93
      %p347 = pneg %p90
      %p348 = scmp.lt.s32.totalorder %s20, 1
      %s349 = scalar_select %p348, %s20, 1
      %s350 = smul.addr %s349, 8
      %s351 = scalar_lea.vmem %s3, %s350
      %p352 = pneg %p119
      %p353 = pneg %p116
      %p354 = scmp.lt.s32.totalorder %s20, 1
      %s355 = scalar_select %p354, %s20, 1
      %s356 = smul.addr %s355, 8
      %s357 = scalar_lea.vmem %s4, %s356
      %p358 = pneg %p145
      %p359 = pneg %p142
      %p360 = pneg %p166
      %p361 = pneg %p163
      %p362 = pneg %p187
      %p363 = pneg %p184
      %p364 = pneg %p208
      %p365 = pneg %p205
      %p366 = pneg %p229
      %p367 = pneg %p226
      %p368 = pneg %p255
      %p369 = pneg %p252
      %p370 = scmp.lt.s32.totalorder %s20, 1
      %s371 = scalar_select %p370, %s20, 1
      %s372 = smul.addr %s371, 2
      %s373 = smul.addr %s372, 8
      %s374 = scalar_lea.vmem %s9, %s373
      %p375 = scmp.lt.s32.totalorder %s20, 1
      %s376 = scalar_select %p375, %s20, 1
      %s377 = smul.addr %s376, 2
      %s378 = smul.addr %s377, 8
      %s379 = scalar_lea.vmem %s0, %s378
      %p380 = scmp.lt.s32.totalorder %s20, 1
      %s381 = scalar_select %p380, %s20, 1
      %s382 = smul.addr %s381, 8
      %s383 = scalar_lea.vmem %s1, %s382
      %p384 = scmp.lt.s32.totalorder %s20, 1
      %s385 = scalar_select %p384, %s20, 1
      %s386 = smul.addr %s385, 8
      %s387 = scalar_lea.vmem %s2, %s386
      %p388 = scmp.lt.s32.totalorder %s20, 1
      %s389 = scalar_select %p388, %s20, 1
      %s390 = smul.addr %s389, 8
      %s391 = scalar_lea.vmem %s3, %s390
      %p392 = scmp.lt.s32.totalorder %s20, 1
      %s393 = scalar_select %p392, %s20, 1
      %s394 = smul.addr %s393, 8
      %s395 = scalar_lea.vmem %s4, %s394
      %p396 = scmp.lt.s32.totalorder %s20, 1
      %s397 = scalar_select %p396, %s20, 1
      %s398 = smul.addr %s397, 2
      %s399 = smul.addr %s398, 8
      %s400 = scalar_lea.vmem %s9, %s399
      %404 = vst [vmem:[#allocation2] sm:$0xf] 0
      %405 = vst [vmem:[#allocation2 + $0xc] sm:$0xf] 0
      %v406 = vlaneseq
      %v407 = vand.u32 %v406, 127
      %v408 = vadd.s32 %v407, 128
      %vm409 = vcmp.lt.s32.totalorder %v407, 0
      %v410 = vsub.s32 0, %v407
      %v411 = vsel %vm409, %v410, %v407
      %v412 = vshrl.u32 %v411, 4
      %v413 = vand.u32 %v411, 15
      %v414 = vsub.s32 0, %v413
      %v415 = vsel %vm409, %v414, %v413
      %vm416 = vcmp.lt.s32.totalorder %v408, 0
      %v417 = vsub.s32 0, %v408
      %v418 = vsel %vm416, %v417, %v408
      %v419 = vshrl.u32 %v418, 4
      %v420 = vand.u32 %v418, 15
      %v421 = vsub.s32 0, %v420
      %v422 = vsel %vm416, %v421, %v420
      %vm423 = vcmp.ne.s32.totalorder %v415, 0
      %vm424 = vcmp.ne.s32.totalorder %v422, 0
      %vm425 = vcmp.lt.s32.totalorder %v415, 0
      %vm426 = vcmp.lt.s32.totalorder %v422, 0
      %vm427 = vmand %vm425, %vm423
      %vm428 = vmand %vm426, %vm424
      %v429 = vadd.s32 %v415, 16
      %v430 = vadd.s32 %v422, 16
      %v431 = vsel %vm427, %v429, %v415
      %v432 = vsel %vm428, %v430, %v422
      %vm433 = vcmp.ge.s32.totalorder %v431, 1
      %vm434 = vcmp.ge.s32.totalorder %v432, 1
      %vm435 = vcmp.le.s32.totalorder %v431, 14
      %vm436 = vcmp.le.s32.totalorder %v432, 14
      %v437 = vld [vmem:[%s379] sm:$0xff]
      %v438 = vld [vmem:[%s379 + $0x8] sm:$0xff]
      %v439 = vld [vmem:[%s383] sm:$0xff]
      %v440 = vld [vmem:[%s387] sm:$0xff]
      %v441 = vadd.f32 %v437, %v438
      %442 = vadd.xlane.f32.xlu0 %v441
      %v443 = vpop.xlane.xlu0 %442
      %v444 = vmul.f32 %v437, %v437
      %v445 = vmul.f32 %v438, %v438
      %v446 = vadd.f32 %v444, %v445
      %447 = vadd.xlane.f32.xlu0 %v446
      %v448 = vpop.xlane.xlu0 %447
      %v449 = vmul.f32 %v443, 0.00390625
      %v450 = vmul.f32 %v448, 0.00390625
      %v451 = vmul.f32 %v449, %v449
      %v452 = vsub.f32 %v450, %v451
      %v453 = vmax.f32 %v452, 0.0
      %v454 = vadd.f32 %v453, 1e-05
      %v455 = vrsqrt.pop %v454
      %v456 = vmul.f32 %v455, %v454
      %v457 = vmul.f32 %v456, %v455
      %v458 = vmul.f32 0.5, %v457
      %v459 = vsub.f32 1.5, %v458
      %v460 = vmul.f32 %v455, %v459
      %vm461 = vweird.f32 %v454
      %vm462 = vweird.f32 %v455
      %vm463 = vmor %vm461, %vm462
      %v464 = vsel %vm463, %v455, %v460
      %v465 = vmul.f32 %v439, %v464
      %v466 = vmul.f32 %v449, %v465
      %v467 = vsub.f32 %v440, %v466
      %469 = vset.pattern.permute.xlu0 0
      %470 = vperm.xlu0 %469, %v465
      %v471 = vpop.permute.xlu0 %470
      %v473 = vmul.f32 %v437, %v471
      %v474 = vmul.f32 %v438, %v471
      %476 = vset.pattern.permute.xlu0 0
      %477 = vperm.xlu0 %476, %v467
      %v478 = vpop.permute.xlu0 %477
      %v480 = vadd.f32 %v473, %v478
      %v481 = vadd.f32 %v474, %v478
      %v482 = vpack.c.bf16 %v481, %v480
      %483 = vst [vmem:[#allocation2 + $0x4] sm:$0xff] %v482
      %v484 = vld [vmem:[#allocation2] sm:$0xff]
      %v485 = vld [vmem:[#allocation2 + $0x8] sm:$0xf]
      %vm486 = vmpackc.low %vm434, %vm433
      %v487 = vsel %vm486, 65537, 0
      %488 = vrot.lane.b32.xlu0 %v487, 111
      %v489 = vpop.permute.xlu0 %488
      %v490 = vrot.slane %v489, 4
      %vm491 = vcmask 908288
      %v492 = vsel %vm491, %v490, %v489
      %v493 = vunpack.c.l.b16 %v492
      %v494 = vunpack.c.h.b16 %v492
      %v495 = vunpack.c.l.b16 0
      %v496 = vunpack.c.h.b16 0
      %vm497 = vcmp.ne.s32.totalorder %v493, %v495
      %vm498 = vcmp.ne.s32.totalorder %v494, %v496
      %vm499 = vmpackc.low %vm498, %vm497
      %v500 = vunpack.c.l.b16 %v490
      %v501 = vunpack.c.h.b16 %v490
      %v502 = vunpack.c.l.b16 0
      %v503 = vunpack.c.h.b16 0
      %vm504 = vcmp.ne.s32.totalorder %v500, %v502
      %vm505 = vcmp.ne.s32.totalorder %v501, %v503
      %vm506 = vmpackc.low %vm505, %vm504
      %v507 = vsel %vm499, %v484, 0
      %v508 = vsel %vm506, %v485, 0
      %v509 = vld [vmem:[%s5] sm:$0xf]
      %s510 = scalar_lea.vmem %s5, 4
      %v511 = vld [vmem:[%s510] sm:$0xf]
      %v514 = vunpack.c.l.b16 %v484
      %v515 = vunpack.c.h.b16 %v484
      %v516 = vunpack.c.l.b16 %v485
      %v517 = vpack.c.b16 %v514, %v514
      %v518 = vpack.c.b16 %v515, %v515
      %v519 = vpack.c.b16 %v516, %v516
      %520 = vrot.lane.b32.xlu0 %v517, 16
      %v521 = vpop.permute.xlu0 %520
      %522 = vrot.lane.b32.xlu0 %v518, 16
      %v523 = vpop.permute.xlu0 %522
      %524 = vrot.lane.b32.xlu0 %v519, 16
      %v525 = vpop.permute.xlu0 %524
      %vm526 = vcmask 130048
      %v527 = vsel %vm526, %v521, %v523
      %v528 = vsel %vm526, %v523, %v525
      %vm529 = vcmask 64512
      %v531 = vsel %vm529, %v511, 0
      %vm533 = vcmask 1043456
      %v535 = vsel %vm533, %v527, 0
      %v538 = vsel %vm533, %v528, 0
      %540 = vmatpush.bf16.msra.mxu0 0
      %541 = vmatpush.bf16.msra.mxu0 0
      %542 = vmatpush.bf16.msra.mxu0 0
      %543 = vmatpush.bf16.msra.mxu0 0
      %544 = vmatpush.bf16.msra.mxu0 0
      %545 = vmatpush.bf16.msra.mxu0 0
      %546 = vmatpush.bf16.msra.mxu0 0
      %547 = vmatpush.bf16.msra.mxu0 %v535
      %548 = vmatmul.bf16.gmra.mxu0 %v531
      %v549 = vpop.f32.mrf.mxu0
      %v550 = vadd.f32 0.0, %v549
      %v551 = vpop.f32.mrf.mxu0
      %552 = vdwg.mxu0
      %553 = vmatpush.bf16.msra.mxu0 0
      %554 = vmatpush.bf16.msra.mxu0 0
      %555 = vmatpush.bf16.msra.mxu0 0
      %556 = vmatpush.bf16.msra.mxu0 0
      %557 = vmatpush.bf16.msra.mxu0 0
      %558 = vmatpush.bf16.msra.mxu0 0
      %559 = vmatpush.bf16.msra.mxu0 0
      %560 = vmatpush.bf16.msra.mxu0 %v538
      %561 = vmatmul.bf16.gmra.mxu0 %v531
      %v562 = vpop.f32.mrf.mxu0
      %v563 = vadd.f32 0.0, %v562
      %v564 = vpop.f32.mrf.mxu0
      %565 = vdwg.mxu0
      %v568 = vunpack.c.l.b16 %v507
      %v569 = vunpack.c.h.b16 %v507
      %v570 = vunpack.c.l.b16 %v508
      %v571 = vpack.c.b16 %v568, %v568
      %v572 = vpack.c.b16 %v569, %v569
      %v573 = vpack.c.b16 %v570, %v570
      %574 = vrot.lane.b32.xlu0 %v571, 17
      %v575 = vpop.permute.xlu0 %574
      %576 = vrot.lane.b32.xlu0 %v572, 17
      %v577 = vpop.permute.xlu0 %576
      %578 = vrot.lane.b32.xlu0 %v573, 17
      %v579 = vpop.permute.xlu0 %578
      %vm580 = vcmask 138240
      %v581 = vsel %vm580, %v575, %v577
      %v582 = vsel %vm580, %v577, %v579
      %v584 = vsel %vm529, %v509, 0
      %v587 = vsel %vm533, %v581, 0
      %v590 = vsel %vm533, %v582, 0
      %592 = vmatpush.bf16.msra.mxu0 0
      %593 = vmatpush.bf16.msra.mxu0 0
      %594 = vmatpush.bf16.msra.mxu0 0
      %595 = vmatpush.bf16.msra.mxu0 0
      %596 = vmatpush.bf16.msra.mxu0 0
      %597 = vmatpush.bf16.msra.mxu0 0
      %598 = vmatpush.bf16.msra.mxu0 0
      %599 = vmatpush.bf16.msra.mxu0 %v587
      %600 = vmatmul.bf16.gmra.mxu0 %v584
      %v601 = vpop.f32.mrf.mxu0
      %v602 = vadd.f32 %v550, %v601
      %v603 = vpop.f32.mrf.mxu0
      %604 = vdwg.mxu0
      %605 = vmatpush.bf16.msra.mxu0 0
      %606 = vmatpush.bf16.msra.mxu0 0
      %607 = vmatpush.bf16.msra.mxu0 0
      %608 = vmatpush.bf16.msra.mxu0 0
      %609 = vmatpush.bf16.msra.mxu0 0
      %610 = vmatpush.bf16.msra.mxu0 0
      %611 = vmatpush.bf16.msra.mxu0 0
      %612 = vmatpush.bf16.msra.mxu0 %v590
      %613 = vmatmul.bf16.gmra.mxu0 %v584
      %v614 = vpop.f32.mrf.mxu0
      %v615 = vadd.f32 %v563, %v614
      %v616 = vpop.f32.mrf.mxu0
      %617 = vdwg.mxu0
      %vm618 = vmpackc.low %vm436, %vm435
      %v619 = vsel %vm618, 65537, 0
      %620 = vrot.lane.b32.xlu0 %v619, 113
      %v621 = vpop.permute.xlu0 %620
      %v622 = vrot.slane %v621, 4
      %vm623 = vcmask 924672
      %v624 = vsel %vm623, %v622, %v621
      %v625 = vunpack.c.l.b16 %v624
      %v626 = vunpack.c.h.b16 %v624
      %v627 = vunpack.c.l.b16 0
      %v628 = vunpack.c.h.b16 0
      %vm629 = vcmp.ne.s32.totalorder %v625, %v627
      %vm630 = vcmp.ne.s32.totalorder %v626, %v628
      %vm631 = vmpackc.low %vm630, %vm629
      %v632 = vunpack.c.l.b16 %v622
      %v633 = vunpack.c.h.b16 %v622
      %v634 = vunpack.c.l.b16 0
      %v635 = vunpack.c.h.b16 0
      %vm636 = vcmp.ne.s32.totalorder %v632, %v634
      %vm637 = vcmp.ne.s32.totalorder %v633, %v635
      %vm638 = vmpackc.low %vm637, %vm636
      %v639 = vsel %vm631, %v484, 0
      %v640 = vsel %vm638, %v485, 0
      %s641 = scalar_lea.vmem %s5, 8
      %v642 = vld [vmem:[%s641] sm:$0xf]
      %v645 = vunpack.c.l.b16 %v639
      %v646 = vunpack.c.h.b16 %v639
      %v647 = vunpack.c.l.b16 %v640
      %v648 = vpack.c.b16 %v645, %v645
      %v649 = vpack.c.b16 %v646, %v646
      %v650 = vpack.c.b16 %v647, %v647
      %651 = vrot.lane.b32.xlu0 %v648, 15
      %v652 = vpop.permute.xlu0 %651
      %653 = vrot.lane.b32.xlu0 %v649, 15
      %v654 = vpop.permute.xlu0 %653
      %655 = vrot.lane.b32.xlu0 %v650, 15
      %v656 = vpop.permute.xlu0 %655
      %vm657 = vcmask 121856
      %v658 = vsel %vm657, %v652, %v654
      %v659 = vsel %vm657, %v654, %v656
      %v661 = vsel %vm529, %v642, 0
      %v664 = vsel %vm533, %v658, 0
      %v667 = vsel %vm533, %v659, 0
      %669 = vmatpush.bf16.msra.mxu0 0
      %670 = vmatpush.bf16.msra.mxu0 0
      %671 = vmatpush.bf16.msra.mxu0 0
      %672 = vmatpush.bf16.msra.mxu0 0
      %673 = vmatpush.bf16.msra.mxu0 0
      %674 = vmatpush.bf16.msra.mxu0 0
      %675 = vmatpush.bf16.msra.mxu0 0
      %676 = vmatpush.bf16.msra.mxu0 %v664
      %677 = vmatmul.bf16.gmra.mxu0 %v661
      %v678 = vpop.f32.mrf.mxu0
      %v679 = vadd.f32 0.0, %v678
      %v680 = vpop.f32.mrf.mxu0
      %681 = vdwg.mxu0
      %682 = vmatpush.bf16.msra.mxu0 0
      %683 = vmatpush.bf16.msra.mxu0 0
      %684 = vmatpush.bf16.msra.mxu0 0
      %685 = vmatpush.bf16.msra.mxu0 0
      %686 = vmatpush.bf16.msra.mxu0 0
      %687 = vmatpush.bf16.msra.mxu0 0
      %688 = vmatpush.bf16.msra.mxu0 0
      %689 = vmatpush.bf16.msra.mxu0 %v667
      %690 = vmatmul.bf16.gmra.mxu0 %v661
      %v691 = vpop.f32.mrf.mxu0
      %v692 = vadd.f32 0.0, %v691
      %v693 = vpop.f32.mrf.mxu0
      %694 = vdwg.mxu0
      %v695 = vadd.f32 %v602, %v679
      %v696 = vadd.f32 %v615, %v692
      %697 = vrot.lane.b32.xlu0 %v487, 127
      %v698 = vpop.permute.xlu0 %697
      %v699 = vrot.slane %v698, 4
      %vm700 = vcmask 1039360
      %v701 = vsel %vm700, %v699, %v698
      %v702 = vunpack.c.l.b16 %v701
      %v703 = vunpack.c.h.b16 %v701
      %v704 = vunpack.c.l.b16 0
      %v705 = vunpack.c.h.b16 0
      %vm706 = vcmp.ne.s32.totalorder %v702, %v704
      %vm707 = vcmp.ne.s32.totalorder %v703, %v705
      %vm708 = vmpackc.low %vm707, %vm706
      %v709 = vunpack.c.l.b16 %v699
      %v710 = vunpack.c.h.b16 %v699
      %v711 = vunpack.c.l.b16 0
      %v712 = vunpack.c.h.b16 0
      %vm713 = vcmp.ne.s32.totalorder %v709, %v711
      %vm714 = vcmp.ne.s32.totalorder %v710, %v712
      %vm715 = vmpackc.low %vm714, %vm713
      %v716 = vsel %vm708, %v484, 0
      %v717 = vsel %vm715, %v485, 0
      %s718 = scalar_lea.vmem %s5, 12
      %v719 = vld [vmem:[%s718] sm:$0xf]
      %v722 = vunpack.c.l.b16 %v716
      %v723 = vunpack.c.h.b16 %v716
      %v724 = vunpack.c.l.b16 %v717
      %v725 = vpack.c.b16 %v722, %v722
      %v726 = vpack.c.b16 %v723, %v723
      %v727 = vpack.c.b16 %v724, %v724
      %728 = vrot.lane.b32.xlu0 %v725, 1
      %v729 = vpop.permute.xlu0 %728
      %730 = vrot.lane.b32.xlu0 %v726, 1
      %v731 = vpop.permute.xlu0 %730
      %732 = vrot.lane.b32.xlu0 %v727, 1
      %v733 = vpop.permute.xlu0 %732
      %vm734 = vcmask 7168
      %v735 = vsel %vm734, %v729, %v731
      %v736 = vsel %vm734, %v731, %v733
      %v738 = vsel %vm529, %v719, 0
      %v741 = vsel %vm533, %v735, 0
      %v744 = vsel %vm533, %v736, 0
      %746 = vmatpush.bf16.msra.mxu0 0
      %747 = vmatpush.bf16.msra.mxu0 0
      %748 = vmatpush.bf16.msra.mxu0 0
      %749 = vmatpush.bf16.msra.mxu0 0
      %750 = vmatpush.bf16.msra.mxu0 0
      %751 = vmatpush.bf16.msra.mxu0 0
      %752 = vmatpush.bf16.msra.mxu0 0
      %753 = vmatpush.bf16.msra.mxu0 %v741
      %754 = vmatmul.bf16.gmra.mxu0 %v738
      %v755 = vpop.f32.mrf.mxu0
      %v756 = vadd.f32 0.0, %v755
      %v757 = vpop.f32.mrf.mxu0
      %758 = vdwg.mxu0
      %759 = vmatpush.bf16.msra.mxu0 0
      %760 = vmatpush.bf16.msra.mxu0 0
      %761 = vmatpush.bf16.msra.mxu0 0
      %762 = vmatpush.bf16.msra.mxu0 0
      %763 = vmatpush.bf16.msra.mxu0 0
      %764 = vmatpush.bf16.msra.mxu0 0
      %765 = vmatpush.bf16.msra.mxu0 0
      %766 = vmatpush.bf16.msra.mxu0 %v744
      %767 = vmatmul.bf16.gmra.mxu0 %v738
      %v768 = vpop.f32.mrf.mxu0
      %v769 = vadd.f32 0.0, %v768
      %v770 = vpop.f32.mrf.mxu0
      %771 = vdwg.mxu0
      %v772 = vadd.f32 %v695, %v756
      %v773 = vadd.f32 %v696, %v769
      %v774 = vld [vmem:[#allocation2 + $0x4] sm:$0xff]
      %s775 = scalar_lea.vmem %s5, 16
      %v776 = vld [vmem:[%s775] sm:$0xf]
      %v778 = vunpack.c.l.b16 %v774
      %v779 = vunpack.c.h.b16 %v774
      %v780 = vpack.c.b16 %v778, %v778
      %v781 = vpack.c.b16 %v779, %v779
      %v783 = vsel %vm529, %v776, 0
      %v786 = vsel %vm533, %v780, 0
      %v789 = vsel %vm533, %v781, 0
      %791 = vmatpush.bf16.msra.mxu0 0
      %792 = vmatpush.bf16.msra.mxu0 0
      %793 = vmatpush.bf16.msra.mxu0 0
      %794 = vmatpush.bf16.msra.mxu0 0
      %795 = vmatpush.bf16.msra.mxu0 0
      %796 = vmatpush.bf16.msra.mxu0 0
      %797 = vmatpush.bf16.msra.mxu0 0
      %798 = vmatpush.bf16.msra.mxu0 %v786
      %799 = vmatmul.bf16.gmra.mxu0 %v783
      %v800 = vpop.f32.mrf.mxu0
      %v801 = vadd.f32 0.0, %v800
      %v802 = vpop.f32.mrf.mxu0
      %803 = vdwg.mxu0
      %804 = vmatpush.bf16.msra.mxu0 0
      %805 = vmatpush.bf16.msra.mxu0 0
      %806 = vmatpush.bf16.msra.mxu0 0
      %807 = vmatpush.bf16.msra.mxu0 0
      %808 = vmatpush.bf16.msra.mxu0 0
      %809 = vmatpush.bf16.msra.mxu0 0
      %810 = vmatpush.bf16.msra.mxu0 0
      %811 = vmatpush.bf16.msra.mxu0 %v789
      %812 = vmatmul.bf16.gmra.mxu0 %v783
      %v813 = vpop.f32.mrf.mxu0
      %v814 = vadd.f32 0.0, %v813
      %v815 = vpop.f32.mrf.mxu0
      %816 = vdwg.mxu0
      %v817 = vadd.f32 %v772, %v801
      %v818 = vadd.f32 %v773, %v814
      %v819 = vld [vmem:[#allocation2 + $0x4] sm:$0xff]
      %v820 = vld [vmem:[#allocation2 + $0xc] sm:$0xf]
      %821 = vrot.lane.b32.xlu0 %v619, 1
      %v822 = vpop.permute.xlu0 %821
      %v823 = vrot.slane %v822, 4
      %v824 = vsel %vm734, %v823, %v822
      %v825 = vunpack.c.l.b16 %v824
      %v826 = vunpack.c.h.b16 %v824
      %v827 = vunpack.c.l.b16 0
      %v828 = vunpack.c.h.b16 0
      %vm829 = vcmp.ne.s32.totalorder %v825, %v827
      %vm830 = vcmp.ne.s32.totalorder %v826, %v828
      %vm831 = vmpackc.low %vm830, %vm829
      %v832 = vunpack.c.l.b16 %v823
      %v833 = vunpack.c.h.b16 %v823
      %v834 = vunpack.c.l.b16 0
      %v835 = vunpack.c.h.b16 0
      %vm836 = vcmp.ne.s32.totalorder %v832, %v834
      %vm837 = vcmp.ne.s32.totalorder %v833, %v835
      %vm838 = vmpackc.low %vm837, %vm836
      %v839 = vsel %vm831, %v819, 0
      %v840 = vsel %vm838, %v820, 0
      %s841 = scalar_lea.vmem %s5, 20
      %v842 = vld [vmem:[%s841] sm:$0xf]
      %v845 = vunpack.c.l.b16 %v839
      %v846 = vunpack.c.h.b16 %v839
      %v847 = vunpack.c.l.b16 %v840
      %v848 = vpack.c.b16 %v845, %v845
      %v849 = vpack.c.b16 %v846, %v846
      %v850 = vpack.c.b16 %v847, %v847
      %851 = vrot.lane.b32.xlu0 %v848, 127
      %v852 = vpop.permute.xlu0 %851
      %853 = vrot.lane.b32.xlu0 %v849, 127
      %v854 = vpop.permute.xlu0 %853
      %855 = vrot.lane.b32.xlu0 %v850, 127
      %v856 = vpop.permute.xlu0 %855
      %v857 = vsel %vm700, %v852, %v854
      %v858 = vsel %vm700, %v854, %v856
      %v860 = vsel %vm529, %v842, 0
      %v863 = vsel %vm533, %v857, 0
      %v866 = vsel %vm533, %v858, 0
      %868 = vmatpush.bf16.msra.mxu0 0
      %869 = vmatpush.bf16.msra.mxu0 0
      %870 = vmatpush.bf16.msra.mxu0 0
      %871 = vmatpush.bf16.msra.mxu0 0
      %872 = vmatpush.bf16.msra.mxu0 0
      %873 = vmatpush.bf16.msra.mxu0 0
      %874 = vmatpush.bf16.msra.mxu0 0
      %875 = vmatpush.bf16.msra.mxu0 %v863
      %876 = vmatmul.bf16.gmra.mxu0 %v860
      %v877 = vpop.f32.mrf.mxu0
      %v878 = vadd.f32 0.0, %v877
      %v879 = vpop.f32.mrf.mxu0
      %880 = vdwg.mxu0
      %881 = vmatpush.bf16.msra.mxu0 0
      %882 = vmatpush.bf16.msra.mxu0 0
      %883 = vmatpush.bf16.msra.mxu0 0
      %884 = vmatpush.bf16.msra.mxu0 0
      %885 = vmatpush.bf16.msra.mxu0 0
      %886 = vmatpush.bf16.msra.mxu0 0
      %887 = vmatpush.bf16.msra.mxu0 0
      %888 = vmatpush.bf16.msra.mxu0 %v866
      %889 = vmatmul.bf16.gmra.mxu0 %v860
      %v890 = vpop.f32.mrf.mxu0
      %v891 = vadd.f32 0.0, %v890
      %v892 = vpop.f32.mrf.mxu0
      %893 = vdwg.mxu0
      %v894 = vadd.f32 %v817, %v878
      %v895 = vadd.f32 %v818, %v891
      %896 = vrot.lane.b32.xlu0 %v487, 15
      %v897 = vpop.permute.xlu0 %896
      %v898 = vrot.slane %v897, 4
      %v899 = vsel %vm657, %v898, %v897
      %v900 = vunpack.c.l.b16 %v899
      %v901 = vunpack.c.h.b16 %v899
      %v902 = vunpack.c.l.b16 0
      %v903 = vunpack.c.h.b16 0
      %vm904 = vcmp.ne.s32.totalorder %v900, %v902
      %vm905 = vcmp.ne.s32.totalorder %v901, %v903
      %vm906 = vmpackc.low %vm905, %vm904
      %v907 = vunpack.c.l.b16 %v898
      %v908 = vunpack.c.h.b16 %v898
      %v909 = vunpack.c.l.b16 0
      %v910 = vunpack.c.h.b16 0
      %vm911 = vcmp.ne.s32.totalorder %v907, %v909
      %vm912 = vcmp.ne.s32.totalorder %v908, %v910
      %vm913 = vmpackc.low %vm912, %vm911
      %v914 = vsel %vm906, %v819, 0
      %v915 = vsel %vm913, %v820, 0
      %s916 = scalar_lea.vmem %s5, 24
      %v917 = vld [vmem:[%s916] sm:$0xf]
      %v920 = vunpack.c.l.b16 %v914
      %v921 = vunpack.c.h.b16 %v914
      %v922 = vunpack.c.l.b16 %v915
      %v923 = vpack.c.b16 %v920, %v920
      %v924 = vpack.c.b16 %v921, %v921
      %v925 = vpack.c.b16 %v922, %v922
      %926 = vrot.lane.b32.xlu0 %v923, 113
      %v927 = vpop.permute.xlu0 %926
      %928 = vrot.lane.b32.xlu0 %v924, 113
      %v929 = vpop.permute.xlu0 %928
      %930 = vrot.lane.b32.xlu0 %v925, 113
      %v931 = vpop.permute.xlu0 %930
      %v932 = vsel %vm623, %v927, %v929
      %v933 = vsel %vm623, %v929, %v931
      %v935 = vsel %vm529, %v917, 0
      %v938 = vsel %vm533, %v932, 0
      %v941 = vsel %vm533, %v933, 0
      %943 = vmatpush.bf16.msra.mxu0 0
      %944 = vmatpush.bf16.msra.mxu0 0
      %945 = vmatpush.bf16.msra.mxu0 0
      %946 = vmatpush.bf16.msra.mxu0 0
      %947 = vmatpush.bf16.msra.mxu0 0
      %948 = vmatpush.bf16.msra.mxu0 0
      %949 = vmatpush.bf16.msra.mxu0 0
      %950 = vmatpush.bf16.msra.mxu0 %v938
      %951 = vmatmul.bf16.gmra.mxu0 %v935
      %v952 = vpop.f32.mrf.mxu0
      %v953 = vadd.f32 0.0, %v952
      %v954 = vpop.f32.mrf.mxu0
      %955 = vdwg.mxu0
      %956 = vmatpush.bf16.msra.mxu0 0
      %957 = vmatpush.bf16.msra.mxu0 0
      %958 = vmatpush.bf16.msra.mxu0 0
      %959 = vmatpush.bf16.msra.mxu0 0
      %960 = vmatpush.bf16.msra.mxu0 0
      %961 = vmatpush.bf16.msra.mxu0 0
      %962 = vmatpush.bf16.msra.mxu0 0
      %963 = vmatpush.bf16.msra.mxu0 %v941
      %964 = vmatmul.bf16.gmra.mxu0 %v935
      %v965 = vpop.f32.mrf.mxu0
      %v966 = vadd.f32 0.0, %v965
      %v967 = vpop.f32.mrf.mxu0
      %968 = vdwg.mxu0
      %v969 = vadd.f32 %v894, %v953
      %v970 = vadd.f32 %v895, %v966
      %s971 = scalar_lea.vmem %s5, 28
      %v972 = vld [vmem:[%s971] sm:$0xf]
      %v975 = vunpack.c.l.b16 %v819
      %v976 = vunpack.c.h.b16 %v819
      %v977 = vunpack.c.l.b16 %v820
      %v978 = vpack.c.b16 %v975, %v975
      %v979 = vpack.c.b16 %v976, %v976
      %v980 = vpack.c.b16 %v977, %v977
      %981 = vrot.lane.b32.xlu0 %v978, 112
      %v982 = vpop.permute.xlu0 %981
      %983 = vrot.lane.b32.xlu0 %v979, 112
      %v984 = vpop.permute.xlu0 %983
      %985 = vrot.lane.b32.xlu0 %v980, 112
      %v986 = vpop.permute.xlu0 %985
      %vm987 = vcmask 916480
      %v988 = vsel %vm987, %v982, %v984
      %v989 = vsel %vm987, %v984, %v986
      %v991 = vsel %vm529, %v972, 0
      %v994 = vsel %vm533, %v988, 0
      %v997 = vsel %vm533, %v989, 0
      %999 = vmatpush.bf16.msra.mxu0 0
      %1000 = vmatpush.bf16.msra.mxu0 0
      %1001 = vmatpush.bf16.msra.mxu0 0
      %1002 = vmatpush.bf16.msra.mxu0 0
      %1003 = vmatpush.bf16.msra.mxu0 0
      %1004 = vmatpush.bf16.msra.mxu0 0
      %1005 = vmatpush.bf16.msra.mxu0 0
      %1006 = vmatpush.bf16.msra.mxu0 %v994
      %1007 = vmatmul.bf16.gmra.mxu0 %v991
      %v1008 = vpop.f32.mrf.mxu0
      %v1009 = vadd.f32 0.0, %v1008
      %v1010 = vpop.f32.mrf.mxu0
      %1011 = vdwg.mxu0
      %1012 = vmatpush.bf16.msra.mxu0 0
      %1013 = vmatpush.bf16.msra.mxu0 0
      %1014 = vmatpush.bf16.msra.mxu0 0
      %1015 = vmatpush.bf16.msra.mxu0 0
      %1016 = vmatpush.bf16.msra.mxu0 0
      %1017 = vmatpush.bf16.msra.mxu0 0
      %1018 = vmatpush.bf16.msra.mxu0 0
      %1019 = vmatpush.bf16.msra.mxu0 %v997
      %1020 = vmatmul.bf16.gmra.mxu0 %v991
      %v1021 = vpop.f32.mrf.mxu0
      %v1022 = vadd.f32 0.0, %v1021
      %v1023 = vpop.f32.mrf.mxu0
      %1024 = vdwg.mxu0
      %v1025 = vadd.f32 %v969, %v1009
      %v1026 = vadd.f32 %v970, %v1022
      %1027 = vrot.lane.b32.xlu0 %v619, 17
      %v1028 = vpop.permute.xlu0 %1027
      %v1029 = vrot.slane %v1028, 4
      %v1030 = vsel %vm580, %v1029, %v1028
      %v1031 = vunpack.c.l.b16 %v1030
      %v1032 = vunpack.c.h.b16 %v1030
      %v1033 = vunpack.c.l.b16 0
      %v1034 = vunpack.c.h.b16 0
      %vm1035 = vcmp.ne.s32.totalorder %v1031, %v1033
      %vm1036 = vcmp.ne.s32.totalorder %v1032, %v1034
      %vm1037 = vmpackc.low %vm1036, %vm1035
      %v1038 = vunpack.c.l.b16 %v1029
      %v1039 = vunpack.c.h.b16 %v1029
      %v1040 = vunpack.c.l.b16 0
      %v1041 = vunpack.c.h.b16 0
      %vm1042 = vcmp.ne.s32.totalorder %v1038, %v1040
      %vm1043 = vcmp.ne.s32.totalorder %v1039, %v1041
      %vm1044 = vmpackc.low %vm1043, %vm1042
      %v1045 = vsel %vm1037, %v819, 0
      %v1046 = vsel %vm1044, %v820, 0
      %s1047 = scalar_lea.vmem %s5, 32
      %v1048 = vld [vmem:[%s1047] sm:$0xf]
      %v1051 = vunpack.c.l.b16 %v1045
      %v1052 = vunpack.c.h.b16 %v1045
      %v1053 = vunpack.c.l.b16 %v1046
      %v1054 = vpack.c.b16 %v1051, %v1051
      %v1055 = vpack.c.b16 %v1052, %v1052
      %v1056 = vpack.c.b16 %v1053, %v1053
      %1057 = vrot.lane.b32.xlu0 %v1054, 111
      %v1058 = vpop.permute.xlu0 %1057
      %1059 = vrot.lane.b32.xlu0 %v1055, 111
      %v1060 = vpop.permute.xlu0 %1059
      %1061 = vrot.lane.b32.xlu0 %v1056, 111
      %v1062 = vpop.permute.xlu0 %1061
      %v1063 = vsel %vm491, %v1058, %v1060
      %v1064 = vsel %vm491, %v1060, %v1062
      %v1066 = vsel %vm529, %v1048, 0
      %v1069 = vsel %vm533, %v1063, 0
      %v1072 = vsel %vm533, %v1064, 0
      %1074 = vmatpush.bf16.msra.mxu0 0
      %1075 = vmatpush.bf16.msra.mxu0 0
      %1076 = vmatpush.bf16.msra.mxu0 0
      %1077 = vmatpush.bf16.msra.mxu0 0
      %1078 = vmatpush.bf16.msra.mxu0 0
      %1079 = vmatpush.bf16.msra.mxu0 0
      %1080 = vmatpush.bf16.msra.mxu0 0
      %1081 = vmatpush.bf16.msra.mxu0 %v1069
      %1082 = vmatmul.bf16.gmra.mxu0 %v1066
      %v1083 = vpop.f32.mrf.mxu0
      %v1084 = vadd.f32 0.0, %v1083
      %v1085 = vpop.f32.mrf.mxu0
      %1086 = vdwg.mxu0
      %1087 = vmatpush.bf16.msra.mxu0 0
      %1088 = vmatpush.bf16.msra.mxu0 0
      %1089 = vmatpush.bf16.msra.mxu0 0
      %1090 = vmatpush.bf16.msra.mxu0 0
      %1091 = vmatpush.bf16.msra.mxu0 0
      %1092 = vmatpush.bf16.msra.mxu0 0
      %1093 = vmatpush.bf16.msra.mxu0 0
      %1094 = vmatpush.bf16.msra.mxu0 %v1072
      %1095 = vmatmul.bf16.gmra.mxu0 %v1066
      %v1096 = vpop.f32.mrf.mxu0
      %v1097 = vadd.f32 0.0, %v1096
      %v1098 = vpop.f32.mrf.mxu0
      %1099 = vdwg.mxu0
      %v1100 = vadd.f32 %v1025, %v1084
      %v1101 = vadd.f32 %v1026, %v1097
      %v1102 = vld [vmem:[%s7] sm:$0xff]
      %1104 = vset.pattern.permute.xlu0 0
      %1105 = vperm.xlu0 %1104, %v1102
      %v1106 = vpop.permute.xlu0 %1105
      %v1108 = vadd.f32 %v1100, %v1106
      %v1109 = vadd.f32 %v1101, %v1106
      %v1110 = vmax.f32 %v1108, 0.0
      %v1111 = vmax.f32 %v1109, 0.0
      %v1112 = vld [vmem:[%s391] sm:$0xff]
      %v1113 = vld [vmem:[%s395] sm:$0xff]
      %v1114 = vadd.f32 %v1110, %v1111
      %1115 = vadd.xlane.f32.xlu0 %v1114
      %v1116 = vpop.xlane.xlu0 %1115
      %v1117 = vmul.f32 %v1110, %v1110
      %v1118 = vmul.f32 %v1111, %v1111
      %v1119 = vadd.f32 %v1117, %v1118
      %1120 = vadd.xlane.f32.xlu0 %v1119
      %v1121 = vpop.xlane.xlu0 %1120
      %v1122 = vmul.f32 %v1116, 0.00390625
      %v1123 = vmul.f32 %v1121, 0.00390625
      %v1124 = vmul.f32 %v1122, %v1122
      %v1125 = vsub.f32 %v1123, %v1124
      %v1126 = vmax.f32 %v1125, 0.0
      %v1127 = vadd.f32 %v1126, 1e-05
      %v1128 = vrsqrt.pop %v1127
      %v1129 = vmul.f32 %v1128, %v1127
      %v1130 = vmul.f32 %v1129, %v1128
      %v1131 = vmul.f32 0.5, %v1130
      %v1132 = vsub.f32 1.5, %v1131
      %v1133 = vmul.f32 %v1128, %v1132
      %vm1134 = vweird.f32 %v1127
      %vm1135 = vweird.f32 %v1128
      %vm1136 = vmor %vm1134, %vm1135
      %v1137 = vsel %vm1136, %v1128, %v1133
      %v1138 = vmul.f32 %v1112, %v1137
      %v1139 = vmul.f32 %v1122, %v1138
      %v1140 = vsub.f32 %v1113, %v1139
      %1142 = vset.pattern.permute.xlu0 0
      %1143 = vperm.xlu0 %1142, %v1138
      %v1144 = vpop.permute.xlu0 %1143
      %v1146 = vmul.f32 %v1110, %v1144
      %v1147 = vmul.f32 %v1111, %v1144
      %1149 = vset.pattern.permute.xlu0 0
      %1150 = vperm.xlu0 %1149, %v1140
      %v1151 = vpop.permute.xlu0 %1150
      %v1153 = vadd.f32 %v1146, %v1151
      %v1154 = vadd.f32 %v1147, %v1151
      %v1155 = vpack.c.bf16 %v1154, %v1153
      %1156 = vst [vmem:[#allocation2 + $0x4] sm:$0xff] %v1155
      %v1157 = vld [vmem:[#allocation2] sm:$0xff]
      %v1158 = vld [vmem:[#allocation2 + $0x8] sm:$0xf]
      %v1159 = vsel %vm499, %v1157, 0
      %v1160 = vsel %vm506, %v1158, 0
      %v1161 = vld [vmem:[%s6] sm:$0xf]
      %s1162 = scalar_lea.vmem %s6, 4
      %v1163 = vld [vmem:[%s1162] sm:$0xf]
      %v1166 = vunpack.c.l.b16 %v1157
      %v1167 = vunpack.c.h.b16 %v1157
      %v1168 = vunpack.c.l.b16 %v1158
      %v1169 = vpack.c.b16 %v1166, %v1166
      %v1170 = vpack.c.b16 %v1167, %v1167
      %v1171 = vpack.c.b16 %v1168, %v1168
      %1172 = vrot.lane.b32.xlu0 %v1169, 16
      %v1173 = vpop.permute.xlu0 %1172
      %1174 = vrot.lane.b32.xlu0 %v1170, 16
      %v1175 = vpop.permute.xlu0 %1174
      %1176 = vrot.lane.b32.xlu0 %v1171, 16
      %v1177 = vpop.permute.xlu0 %1176
      %v1178 = vsel %vm526, %v1173, %v1175
      %v1179 = vsel %vm526, %v1175, %v1177
      %v1181 = vsel %vm529, %v1163, 0
      %v1184 = vsel %vm533, %v1178, 0
      %v1187 = vsel %vm533, %v1179, 0
      %1189 = vmatpush.bf16.msra.mxu0 0
      %1190 = vmatpush.bf16.msra.mxu0 0
      %1191 = vmatpush.bf16.msra.mxu0 0
      %1192 = vmatpush.bf16.msra.mxu0 0
      %1193 = vmatpush.bf16.msra.mxu0 0
      %1194 = vmatpush.bf16.msra.mxu0 0
      %1195 = vmatpush.bf16.msra.mxu0 0
      %1196 = vmatpush.bf16.msra.mxu0 %v1184
      %1197 = vmatmul.bf16.gmra.mxu0 %v1181
      %v1198 = vpop.f32.mrf.mxu0
      %v1199 = vadd.f32 0.0, %v1198
      %v1200 = vpop.f32.mrf.mxu0
      %1201 = vdwg.mxu0
      %1202 = vmatpush.bf16.msra.mxu0 0
      %1203 = vmatpush.bf16.msra.mxu0 0
      %1204 = vmatpush.bf16.msra.mxu0 0
      %1205 = vmatpush.bf16.msra.mxu0 0
      %1206 = vmatpush.bf16.msra.mxu0 0
      %1207 = vmatpush.bf16.msra.mxu0 0
      %1208 = vmatpush.bf16.msra.mxu0 0
      %1209 = vmatpush.bf16.msra.mxu0 %v1187
      %1210 = vmatmul.bf16.gmra.mxu0 %v1181
      %v1211 = vpop.f32.mrf.mxu0
      %v1212 = vadd.f32 0.0, %v1211
      %v1213 = vpop.f32.mrf.mxu0
      %1214 = vdwg.mxu0
      %v1217 = vunpack.c.l.b16 %v1159
      %v1218 = vunpack.c.h.b16 %v1159
      %v1219 = vunpack.c.l.b16 %v1160
      %v1220 = vpack.c.b16 %v1217, %v1217
      %v1221 = vpack.c.b16 %v1218, %v1218
      %v1222 = vpack.c.b16 %v1219, %v1219
      %1223 = vrot.lane.b32.xlu0 %v1220, 17
      %v1224 = vpop.permute.xlu0 %1223
      %1225 = vrot.lane.b32.xlu0 %v1221, 17
      %v1226 = vpop.permute.xlu0 %1225
      %1227 = vrot.lane.b32.xlu0 %v1222, 17
      %v1228 = vpop.permute.xlu0 %1227
      %v1229 = vsel %vm580, %v1224, %v1226
      %v1230 = vsel %vm580, %v1226, %v1228
      %v1232 = vsel %vm529, %v1161, 0
      %v1235 = vsel %vm533, %v1229, 0
      %v1238 = vsel %vm533, %v1230, 0
      %1240 = vmatpush.bf16.msra.mxu0 0
      %1241 = vmatpush.bf16.msra.mxu0 0
      %1242 = vmatpush.bf16.msra.mxu0 0
      %1243 = vmatpush.bf16.msra.mxu0 0
      %1244 = vmatpush.bf16.msra.mxu0 0
      %1245 = vmatpush.bf16.msra.mxu0 0
      %1246 = vmatpush.bf16.msra.mxu0 0
      %1247 = vmatpush.bf16.msra.mxu0 %v1235
      %1248 = vmatmul.bf16.gmra.mxu0 %v1232
      %v1249 = vpop.f32.mrf.mxu0
      %v1250 = vadd.f32 %v1199, %v1249
      %v1251 = vpop.f32.mrf.mxu0
      %1252 = vdwg.mxu0
      %1253 = vmatpush.bf16.msra.mxu0 0
      %1254 = vmatpush.bf16.msra.mxu0 0
      %1255 = vmatpush.bf16.msra.mxu0 0
      %1256 = vmatpush.bf16.msra.mxu0 0
      %1257 = vmatpush.bf16.msra.mxu0 0
      %1258 = vmatpush.bf16.msra.mxu0 0
      %1259 = vmatpush.bf16.msra.mxu0 0
      %1260 = vmatpush.bf16.msra.mxu0 %v1238
      %1261 = vmatmul.bf16.gmra.mxu0 %v1232
      %v1262 = vpop.f32.mrf.mxu0
      %v1263 = vadd.f32 %v1212, %v1262
      %v1264 = vpop.f32.mrf.mxu0
      %1265 = vdwg.mxu0
      %v1266 = vsel %vm631, %v1157, 0
      %v1267 = vsel %vm638, %v1158, 0
      %s1268 = scalar_lea.vmem %s6, 8
      %v1269 = vld [vmem:[%s1268] sm:$0xf]
      %v1272 = vunpack.c.l.b16 %v1266
      %v1273 = vunpack.c.h.b16 %v1266
      %v1274 = vunpack.c.l.b16 %v1267
      %v1275 = vpack.c.b16 %v1272, %v1272
      %v1276 = vpack.c.b16 %v1273, %v1273
      %v1277 = vpack.c.b16 %v1274, %v1274
      %1278 = vrot.lane.b32.xlu0 %v1275, 15
      %v1279 = vpop.permute.xlu0 %1278
      %1280 = vrot.lane.b32.xlu0 %v1276, 15
      %v1281 = vpop.permute.xlu0 %1280
      %1282 = vrot.lane.b32.xlu0 %v1277, 15
      %v1283 = vpop.permute.xlu0 %1282
      %v1284 = vsel %vm657, %v1279, %v1281
      %v1285 = vsel %vm657, %v1281, %v1283
      %v1287 = vsel %vm529, %v1269, 0
      %v1290 = vsel %vm533, %v1284, 0
      %v1293 = vsel %vm533, %v1285, 0
      %1295 = vmatpush.bf16.msra.mxu0 0
      %1296 = vmatpush.bf16.msra.mxu0 0
      %1297 = vmatpush.bf16.msra.mxu0 0
      %1298 = vmatpush.bf16.msra.mxu0 0
      %1299 = vmatpush.bf16.msra.mxu0 0
      %1300 = vmatpush.bf16.msra.mxu0 0
      %1301 = vmatpush.bf16.msra.mxu0 0
      %1302 = vmatpush.bf16.msra.mxu0 %v1290
      %1303 = vmatmul.bf16.gmra.mxu0 %v1287
      %v1304 = vpop.f32.mrf.mxu0
      %v1305 = vadd.f32 0.0, %v1304
      %v1306 = vpop.f32.mrf.mxu0
      %1307 = vdwg.mxu0
      %1308 = vmatpush.bf16.msra.mxu0 0
      %1309 = vmatpush.bf16.msra.mxu0 0
      %1310 = vmatpush.bf16.msra.mxu0 0
      %1311 = vmatpush.bf16.msra.mxu0 0
      %1312 = vmatpush.bf16.msra.mxu0 0
      %1313 = vmatpush.bf16.msra.mxu0 0
      %1314 = vmatpush.bf16.msra.mxu0 0
      %1315 = vmatpush.bf16.msra.mxu0 %v1293
      %1316 = vmatmul.bf16.gmra.mxu0 %v1287
      %v1317 = vpop.f32.mrf.mxu0
      %v1318 = vadd.f32 0.0, %v1317
      %v1319 = vpop.f32.mrf.mxu0
      %1320 = vdwg.mxu0
      %v1321 = vadd.f32 %v1250, %v1305
      %v1322 = vadd.f32 %v1263, %v1318
      %v1323 = vsel %vm708, %v1157, 0
      %v1324 = vsel %vm715, %v1158, 0
      %s1325 = scalar_lea.vmem %s6, 12
      %v1326 = vld [vmem:[%s1325] sm:$0xf]
      %v1329 = vunpack.c.l.b16 %v1323
      %v1330 = vunpack.c.h.b16 %v1323
      %v1331 = vunpack.c.l.b16 %v1324
      %v1332 = vpack.c.b16 %v1329, %v1329
      %v1333 = vpack.c.b16 %v1330, %v1330
      %v1334 = vpack.c.b16 %v1331, %v1331
      %1335 = vrot.lane.b32.xlu0 %v1332, 1
      %v1336 = vpop.permute.xlu0 %1335
      %1337 = vrot.lane.b32.xlu0 %v1333, 1
      %v1338 = vpop.permute.xlu0 %1337
      %1339 = vrot.lane.b32.xlu0 %v1334, 1
      %v1340 = vpop.permute.xlu0 %1339
      %v1341 = vsel %vm734, %v1336, %v1338
      %v1342 = vsel %vm734, %v1338, %v1340
      %v1344 = vsel %vm529, %v1326, 0
      %v1347 = vsel %vm533, %v1341, 0
      %v1350 = vsel %vm533, %v1342, 0
      %1352 = vmatpush.bf16.msra.mxu0 0
      %1353 = vmatpush.bf16.msra.mxu0 0
      %1354 = vmatpush.bf16.msra.mxu0 0
      %1355 = vmatpush.bf16.msra.mxu0 0
      %1356 = vmatpush.bf16.msra.mxu0 0
      %1357 = vmatpush.bf16.msra.mxu0 0
      %1358 = vmatpush.bf16.msra.mxu0 0
      %1359 = vmatpush.bf16.msra.mxu0 %v1347
      %1360 = vmatmul.bf16.gmra.mxu0 %v1344
      %v1361 = vpop.f32.mrf.mxu0
      %v1362 = vadd.f32 0.0, %v1361
      %v1363 = vpop.f32.mrf.mxu0
      %1364 = vdwg.mxu0
      %1365 = vmatpush.bf16.msra.mxu0 0
      %1366 = vmatpush.bf16.msra.mxu0 0
      %1367 = vmatpush.bf16.msra.mxu0 0
      %1368 = vmatpush.bf16.msra.mxu0 0
      %1369 = vmatpush.bf16.msra.mxu0 0
      %1370 = vmatpush.bf16.msra.mxu0 0
      %1371 = vmatpush.bf16.msra.mxu0 0
      %1372 = vmatpush.bf16.msra.mxu0 %v1350
      %1373 = vmatmul.bf16.gmra.mxu0 %v1344
      %v1374 = vpop.f32.mrf.mxu0
      %v1375 = vadd.f32 0.0, %v1374
      %v1376 = vpop.f32.mrf.mxu0
      %1377 = vdwg.mxu0
      %v1378 = vadd.f32 %v1321, %v1362
      %v1379 = vadd.f32 %v1322, %v1375
      %v1380 = vld [vmem:[#allocation2 + $0x4] sm:$0xff]
      %s1381 = scalar_lea.vmem %s6, 16
      %v1382 = vld [vmem:[%s1381] sm:$0xf]
      %v1384 = vunpack.c.l.b16 %v1380
      %v1385 = vunpack.c.h.b16 %v1380
      %v1386 = vpack.c.b16 %v1384, %v1384
      %v1387 = vpack.c.b16 %v1385, %v1385
      %v1389 = vsel %vm529, %v1382, 0
      %v1392 = vsel %vm533, %v1386, 0
      %v1395 = vsel %vm533, %v1387, 0
      %1397 = vmatpush.bf16.msra.mxu0 0
      %1398 = vmatpush.bf16.msra.mxu0 0
      %1399 = vmatpush.bf16.msra.mxu0 0
      %1400 = vmatpush.bf16.msra.mxu0 0
      %1401 = vmatpush.bf16.msra.mxu0 0
      %1402 = vmatpush.bf16.msra.mxu0 0
      %1403 = vmatpush.bf16.msra.mxu0 0
      %1404 = vmatpush.bf16.msra.mxu0 %v1392
      %1405 = vmatmul.bf16.gmra.mxu0 %v1389
      %v1406 = vpop.f32.mrf.mxu0
      %v1407 = vadd.f32 0.0, %v1406
      %v1408 = vpop.f32.mrf.mxu0
      %1409 = vdwg.mxu0
      %1410 = vmatpush.bf16.msra.mxu0 0
      %1411 = vmatpush.bf16.msra.mxu0 0
      %1412 = vmatpush.bf16.msra.mxu0 0
      %1413 = vmatpush.bf16.msra.mxu0 0
      %1414 = vmatpush.bf16.msra.mxu0 0
      %1415 = vmatpush.bf16.msra.mxu0 0
      %1416 = vmatpush.bf16.msra.mxu0 0
      %1417 = vmatpush.bf16.msra.mxu0 %v1395
      %1418 = vmatmul.bf16.gmra.mxu0 %v1389
      %v1419 = vpop.f32.mrf.mxu0
      %v1420 = vadd.f32 0.0, %v1419
      %v1421 = vpop.f32.mrf.mxu0
      %1422 = vdwg.mxu0
      %v1423 = vadd.f32 %v1378, %v1407
      %v1424 = vadd.f32 %v1379, %v1420
      %v1425 = vld [vmem:[#allocation2 + $0x4] sm:$0xff]
      %v1426 = vld [vmem:[#allocation2 + $0xc] sm:$0xf]
      %v1427 = vsel %vm831, %v1425, 0
      %v1428 = vsel %vm838, %v1426, 0
      %s1429 = scalar_lea.vmem %s6, 20
      %v1430 = vld [vmem:[%s1429] sm:$0xf]
      %v1433 = vunpack.c.l.b16 %v1427
      %v1434 = vunpack.c.h.b16 %v1427
      %v1435 = vunpack.c.l.b16 %v1428
      %v1436 = vpack.c.b16 %v1433, %v1433
      %v1437 = vpack.c.b16 %v1434, %v1434
      %v1438 = vpack.c.b16 %v1435, %v1435
      %1439 = vrot.lane.b32.xlu0 %v1436, 127
      %v1440 = vpop.permute.xlu0 %1439
      %1441 = vrot.lane.b32.xlu0 %v1437, 127
      %v1442 = vpop.permute.xlu0 %1441
      %1443 = vrot.lane.b32.xlu0 %v1438, 127
      %v1444 = vpop.permute.xlu0 %1443
      %v1445 = vsel %vm700, %v1440, %v1442
      %v1446 = vsel %vm700, %v1442, %v1444
      %v1448 = vsel %vm529, %v1430, 0
      %v1451 = vsel %vm533, %v1445, 0
      %v1454 = vsel %vm533, %v1446, 0
      %1456 = vmatpush.bf16.msra.mxu0 0
      %1457 = vmatpush.bf16.msra.mxu0 0
      %1458 = vmatpush.bf16.msra.mxu0 0
      %1459 = vmatpush.bf16.msra.mxu0 0
      %1460 = vmatpush.bf16.msra.mxu0 0
      %1461 = vmatpush.bf16.msra.mxu0 0
      %1462 = vmatpush.bf16.msra.mxu0 0
      %1463 = vmatpush.bf16.msra.mxu0 %v1451
      %1464 = vmatmul.bf16.gmra.mxu0 %v1448
      %v1465 = vpop.f32.mrf.mxu0
      %v1466 = vadd.f32 0.0, %v1465
      %v1467 = vpop.f32.mrf.mxu0
      %1468 = vdwg.mxu0
      %1469 = vmatpush.bf16.msra.mxu0 0
      %1470 = vmatpush.bf16.msra.mxu0 0
      %1471 = vmatpush.bf16.msra.mxu0 0
      %1472 = vmatpush.bf16.msra.mxu0 0
      %1473 = vmatpush.bf16.msra.mxu0 0
      %1474 = vmatpush.bf16.msra.mxu0 0
      %1475 = vmatpush.bf16.msra.mxu0 0
      %1476 = vmatpush.bf16.msra.mxu0 %v1454
      %1477 = vmatmul.bf16.gmra.mxu0 %v1448
      %v1478 = vpop.f32.mrf.mxu0
      %v1479 = vadd.f32 0.0, %v1478
      %v1480 = vpop.f32.mrf.mxu0
      %1481 = vdwg.mxu0
      %v1482 = vadd.f32 %v1423, %v1466
      %v1483 = vadd.f32 %v1424, %v1479
      %v1484 = vsel %vm906, %v1425, 0
      %v1485 = vsel %vm913, %v1426, 0
      %s1486 = scalar_lea.vmem %s6, 24
      %v1487 = vld [vmem:[%s1486] sm:$0xf]
      %v1490 = vunpack.c.l.b16 %v1484
      %v1491 = vunpack.c.h.b16 %v1484
      %v1492 = vunpack.c.l.b16 %v1485
      %v1493 = vpack.c.b16 %v1490, %v1490
      %v1494 = vpack.c.b16 %v1491, %v1491
      %v1495 = vpack.c.b16 %v1492, %v1492
      %1496 = vrot.lane.b32.xlu0 %v1493, 113
      %v1497 = vpop.permute.xlu0 %1496
      %1498 = vrot.lane.b32.xlu0 %v1494, 113
      %v1499 = vpop.permute.xlu0 %1498
      %1500 = vrot.lane.b32.xlu0 %v1495, 113
      %v1501 = vpop.permute.xlu0 %1500
      %v1502 = vsel %vm623, %v1497, %v1499
      %v1503 = vsel %vm623, %v1499, %v1501
      %v1505 = vsel %vm529, %v1487, 0
      %v1508 = vsel %vm533, %v1502, 0
      %v1511 = vsel %vm533, %v1503, 0
      %1513 = vmatpush.bf16.msra.mxu0 0
      %1514 = vmatpush.bf16.msra.mxu0 0
      %1515 = vmatpush.bf16.msra.mxu0 0
      %1516 = vmatpush.bf16.msra.mxu0 0
      %1517 = vmatpush.bf16.msra.mxu0 0
      %1518 = vmatpush.bf16.msra.mxu0 0
      %1519 = vmatpush.bf16.msra.mxu0 0
      %1520 = vmatpush.bf16.msra.mxu0 %v1508
      %1521 = vmatmul.bf16.gmra.mxu0 %v1505
      %v1522 = vpop.f32.mrf.mxu0
      %v1523 = vadd.f32 0.0, %v1522
      %v1524 = vpop.f32.mrf.mxu0
      %1525 = vdwg.mxu0
      %1526 = vmatpush.bf16.msra.mxu0 0
      %1527 = vmatpush.bf16.msra.mxu0 0
      %1528 = vmatpush.bf16.msra.mxu0 0
      %1529 = vmatpush.bf16.msra.mxu0 0
      %1530 = vmatpush.bf16.msra.mxu0 0
      %1531 = vmatpush.bf16.msra.mxu0 0
      %1532 = vmatpush.bf16.msra.mxu0 0
      %1533 = vmatpush.bf16.msra.mxu0 %v1511
      %1534 = vmatmul.bf16.gmra.mxu0 %v1505
      %v1535 = vpop.f32.mrf.mxu0
      %v1536 = vadd.f32 0.0, %v1535
      %v1537 = vpop.f32.mrf.mxu0
      %1538 = vdwg.mxu0
      %v1539 = vadd.f32 %v1482, %v1523
      %v1540 = vadd.f32 %v1483, %v1536
      %s1541 = scalar_lea.vmem %s6, 28
      %v1542 = vld [vmem:[%s1541] sm:$0xf]
      %v1545 = vunpack.c.l.b16 %v1425
      %v1546 = vunpack.c.h.b16 %v1425
      %v1547 = vunpack.c.l.b16 %v1426
      %v1548 = vpack.c.b16 %v1545, %v1545
      %v1549 = vpack.c.b16 %v1546, %v1546
      %v1550 = vpack.c.b16 %v1547, %v1547
      %1551 = vrot.lane.b32.xlu0 %v1548, 112
      %v1552 = vpop.permute.xlu0 %1551
      %1553 = vrot.lane.b32.xlu0 %v1549, 112
      %v1554 = vpop.permute.xlu0 %1553
      %1555 = vrot.lane.b32.xlu0 %v1550, 112
      %v1556 = vpop.permute.xlu0 %1555
      %v1557 = vsel %vm987, %v1552, %v1554
      %v1558 = vsel %vm987, %v1554, %v1556
      %v1560 = vsel %vm529, %v1542, 0
      %v1563 = vsel %vm533, %v1557, 0
      %v1566 = vsel %vm533, %v1558, 0
      %1568 = vmatpush.bf16.msra.mxu0 0
      %1569 = vmatpush.bf16.msra.mxu0 0
      %1570 = vmatpush.bf16.msra.mxu0 0
      %1571 = vmatpush.bf16.msra.mxu0 0
      %1572 = vmatpush.bf16.msra.mxu0 0
      %1573 = vmatpush.bf16.msra.mxu0 0
      %1574 = vmatpush.bf16.msra.mxu0 0
      %1575 = vmatpush.bf16.msra.mxu0 %v1563
      %1576 = vmatmul.bf16.gmra.mxu0 %v1560
      %v1577 = vpop.f32.mrf.mxu0
      %v1578 = vadd.f32 0.0, %v1577
      %v1579 = vpop.f32.mrf.mxu0
      %1580 = vdwg.mxu0
      %1581 = vmatpush.bf16.msra.mxu0 0
      %1582 = vmatpush.bf16.msra.mxu0 0
      %1583 = vmatpush.bf16.msra.mxu0 0
      %1584 = vmatpush.bf16.msra.mxu0 0
      %1585 = vmatpush.bf16.msra.mxu0 0
      %1586 = vmatpush.bf16.msra.mxu0 0
      %1587 = vmatpush.bf16.msra.mxu0 0
      %1588 = vmatpush.bf16.msra.mxu0 %v1566
      %1589 = vmatmul.bf16.gmra.mxu0 %v1560
      %v1590 = vpop.f32.mrf.mxu0
      %v1591 = vadd.f32 0.0, %v1590
      %v1592 = vpop.f32.mrf.mxu0
      %1593 = vdwg.mxu0
      %v1594 = vadd.f32 %v1539, %v1578
      %v1595 = vadd.f32 %v1540, %v1591
      %v1596 = vsel %vm1037, %v1425, 0
      %v1597 = vsel %vm1044, %v1426, 0
      %s1598 = scalar_lea.vmem %s6, 32
      %v1599 = vld [vmem:[%s1598] sm:$0xf]
      %v1602 = vunpack.c.l.b16 %v1596
      %v1603 = vunpack.c.h.b16 %v1596
      %v1604 = vunpack.c.l.b16 %v1597
      %v1605 = vpack.c.b16 %v1602, %v1602
      %v1606 = vpack.c.b16 %v1603, %v1603
      %v1607 = vpack.c.b16 %v1604, %v1604
      %1608 = vrot.lane.b32.xlu0 %v1605, 111
      %v1609 = vpop.permute.xlu0 %1608
      %1610 = vrot.lane.b32.xlu0 %v1606, 111
      %v1611 = vpop.permute.xlu0 %1610
      %1612 = vrot.lane.b32.xlu0 %v1607, 111
      %v1613 = vpop.permute.xlu0 %1612
      %v1614 = vsel %vm491, %v1609, %v1611
      %v1615 = vsel %vm491, %v1611, %v1613
      %v1617 = vsel %vm529, %v1599, 0
      %v1620 = vsel %vm533, %v1614, 0
      %v1623 = vsel %vm533, %v1615, 0
      %1625 = vmatpush.bf16.msra.mxu0 0
      %1626 = vmatpush.bf16.msra.mxu0 0
      %1627 = vmatpush.bf16.msra.mxu0 0
      %1628 = vmatpush.bf16.msra.mxu0 0
      %1629 = vmatpush.bf16.msra.mxu0 0
      %1630 = vmatpush.bf16.msra.mxu0 0
      %1631 = vmatpush.bf16.msra.mxu0 0
      %1632 = vmatpush.bf16.msra.mxu0 %v1620
      %1633 = vmatmul.bf16.gmra.mxu0 %v1617
      %v1634 = vpop.f32.mrf.mxu0
      %v1635 = vadd.f32 0.0, %v1634
      %v1636 = vpop.f32.mrf.mxu0
      %1637 = vdwg.mxu0
      %1638 = vmatpush.bf16.msra.mxu0 0
      %1639 = vmatpush.bf16.msra.mxu0 0
      %1640 = vmatpush.bf16.msra.mxu0 0
      %1641 = vmatpush.bf16.msra.mxu0 0
      %1642 = vmatpush.bf16.msra.mxu0 0
      %1643 = vmatpush.bf16.msra.mxu0 0
      %1644 = vmatpush.bf16.msra.mxu0 0
      %1645 = vmatpush.bf16.msra.mxu0 %v1623
      %1646 = vmatmul.bf16.gmra.mxu0 %v1617
      %v1647 = vpop.f32.mrf.mxu0
      %v1648 = vadd.f32 0.0, %v1647
      %v1649 = vpop.f32.mrf.mxu0
      %1650 = vdwg.mxu0
      %v1651 = vadd.f32 %v1594, %v1635
      %v1652 = vadd.f32 %v1595, %v1648
      %v1653 = vld [vmem:[%s8] sm:$0xff]
      %1655 = vset.pattern.permute.xlu0 0
      %1656 = vperm.xlu0 %1655, %v1653
      %v1657 = vpop.permute.xlu0 %1656
      %v1659 = vadd.f32 %v1651, %v1657
      %v1660 = vadd.f32 %v1652, %v1657
      %v1661 = vmax.f32 %v1659, 0.0
      %v1662 = vmax.f32 %v1660, 0.0
      %1663 = vst [vmem:[%s400] sm:$0xff] %v1661
      %1664 = vst [vmem:[%s400 + $0x8] sm:$0xff] %v1662
      %p1665 = scmp.lt.s32.totalorder %s20, 1
      %s1666 = scalar_select %p1665, %s20, 1
      %s1667 = smul.addr %s1666, 2
      %s1668 = smul.addr %s1667, 8
      %s1669 = scalar_lea.vmem %s9, %s1668
      // Predicated region
      $region57: #{low_block_forward.1} parent=55 // pred_check
        %p1670 = pneg %p252
      $region58: #{low_block_forward.1} parent=55 // pred_check_branch
        %1672 = sbr.rel (%p1670) target = $region60
      $region59: #{low_block_forward.1} parent=55 // pred_region
        _
      $region60: #{low_block_forward.1} parent=55 // pred_fallthru
        _
    $region56: #{low_block_forward.1} parent=5 // pred_fallthru
      _
    %p1673 = scmp.le.s32.totalorder 2, %s15
    // Predicated region
    $region61: #{low_block_forward.1} parent=5 // pred_check
      %p1674 = pneg %p1673
    $region62: #{low_block_forward.1} parent=5 // pred_check_branch
      %1676 = sbr.rel (%p1674) target = $region64
    $region63: #{low_block_forward.1} parent=5 // pred_region
      %s1677 = ssub.s32 %s15, 2
      // Predicated region
      $region65: #{low_block_forward.1} parent=63 // pred_check
        %p1678 = pneg %p258
      $region66: #{low_block_forward.1} parent=63 // pred_check_branch
        %1680 = sbr.rel (%p1678) target = $region68
      $region67: #{low_block_forward.1} parent=63 // pred_region
        %p1681 = scmp.lt.s32.totalorder %s21, 1
        %s1682 = scalar_select %p1681, %s21, 1
        %s1683 = smul.addr %s1682, 2
        %s1684 = smul.addr %s1683, 8
        %s1685 = scalar_lea.vmem %s9, %s1684
      $region68: #{low_block_forward.1} parent=63 // pred_fallthru
        _
    $region64: #{low_block_forward.1} parent=5 // pred_fallthru
      _
  $region6: #{low_block_forward.1} parent=0 // loop_footer
    %s19 = sadd.s32 1, %s15
  $region7: #{low_block_forward.1} parent=0 // loop_footer_branch
    %14 = sbr.rel target = $region3
  $region8: #{low_block_forward.1} parent=0 // loop_exit
    _

</llo_original>
